<compile_context>
chip_gen: v7x
topology: tpu7x:2x2x1
jax: 0.10.0
libtpu: 0.0.40
codegen_flags: <defaults>
</compile_context>

<pallas_src>
import functools

import jax
import jax.numpy as jnp
from jax import lax
from jax.experimental import pallas as pl
from jax.experimental.pallas import tpu as pltpu


def _bottleneck_kernel(x_ref, w1_ref, b1_ref, w2_ref, b2_ref, w3_ref, b3_ref,
                       o_ref, *, H, W):
    # x_ref : (B, Cin,  H*W)   B images per grid step, spatial on the lane axis
    # w1_ref: (width, Cin)         conv1 (1x1), BN1 scale folded in
    # w2_ref: (width, 9*width)     conv2 (3x3, pad=1), BN2 scale folded in
    # w3_ref: (Cout, width)        conv3 (1x1), BN3 scale folded in
    # b*_ref: (C, 1)               folded BN biases (broadcast over lanes)
    # o_ref : (B, Cout, H*W)
    B, _, HW = x_ref.shape

    # ---- 3x3 tap shifts + boundary masks (hoisted: shared by all images) ----
    p = lax.broadcasted_iota(jnp.int32, (1, HW), 1)        # flat spatial index
    if (W & (W - 1)) == 0:
        xcol = jnp.bitwise_and(p, W - 1)                   # p % W (pow-2 fast path)
    else:
        xcol = p % W
    taps_meta = []                                         # (lane shift, mask|None)
    for ky in range(3):
        for kx in range(3):
            off = (ky - 1) * W + (kx - 1)
            conds = []
            if ky == 0:
                conds.append(p >= W)                       # y-1 >= 0
            if ky == 2:
                conds.append(p < (H - 1) * W)              # y+1 <  H
            if kx == 0:
                conds.append(xcol >= 1)                    # x-1 >= 0
            if kx == 2:
                conds.append(xcol < (W - 1))               # x+1 <  W
            mask = None
            for c in conds:
                mask = c if mask is None else (mask & c)
            taps_meta.append(((-off) % HW, mask))

    for b in range(B):
        x = x_ref[b].astype(jnp.float32)                   # (Cin, HW)

        # ---- conv1 (1x1, BN1 folded) + bias + ReLU ----
        h1 = jnp.dot(w1_ref[...], x, preferred_element_type=jnp.float32)
        h1 = jnp.maximum(h1 + b1_ref[...], 0.0)            # (width, HW)

        # ---- conv2 (3x3, pad=1): im2col via lane rolls + masks, one MXU dot ----
        taps = []
        for shift, mask in taps_meta:
            t = h1 if shift == 0 else pltpu.roll(h1, shift=shift, axis=1)
            if mask is not None:
                t = jnp.where(mask, t, 0.0)
            taps.append(t)
        col = jnp.concatenate(taps, axis=0)                # (9*width, HW)
        h2 = jnp.dot(w2_ref[...], col, preferred_element_type=jnp.float32)
        h2 = jnp.maximum(h2 + b2_ref[...], 0.0)            # (width, HW)

        # ---- conv3 (1x1, BN3 folded) + bias ----
        h3 = jnp.dot(w3_ref[...], h2, preferred_element_type=jnp.float32)
        h3 = h3 + b3_ref[...]                              # (Cout, HW)

        # ---- residual (re-read the resident input block) + ReLU ----
        out = jnp.maximum(h3 + x_ref[b].astype(jnp.float32), 0.0)
        o_ref[b] = out.astype(o_ref.dtype)


def fold_bn(gamma, beta, mean, var, eps=1e-5):
    scale = gamma / jnp.sqrt(var + eps)
    bias = beta - mean * scale
    return scale, bias


def bottleneck_pallas(x_nchw, w1, w2, w3, bn1, bn2, bn3, *,
                      images_per_block=1, eps=1e-5):
    """x_nchw: (N, Cin, H, W).  w1: (width, Cin, 1, 1), w2: (width, width, 3, 3),
    w3: (Cout, width, 1, 1) in PyTorch OIHW layout.  bn* = (gamma, beta, mean, var)."""
    N, Cin, H, W = x_nchw.shape
    width = w1.shape[0]
    Cout = w3.shape[0]
    assert Cout == Cin, "identity residual requires inplanes == planes * 4"
    assert N % images_per_block == 0
    HW = H * W

    # Fold BN (inference) scales into the conv weights; keep only bias adds.
    s1, b1 = fold_bn(*bn1, eps=eps)
    s2, b2 = fold_bn(*bn2, eps=eps)
    s3, b3 = fold_bn(*bn3, eps=eps)

    w1t = (w1[:, :, 0, 0] * s1[:, None]).astype(jnp.float32)          # (width, Cin)
    w2t = jnp.transpose(w2, (0, 2, 3, 1)).reshape(width, 9 * width)   # (O, ky*kx*I)
    w2t = (w2t * s2[:, None]).astype(jnp.float32)                     # (width, 9*width)
    w3t = (w3[:, :, 0, 0] * s3[:, None]).astype(jnp.float32)          # (Cout, width)
    b1c = b1[:, None].astype(jnp.float32)                             # (width, 1)
    b2c = b2[:, None].astype(jnp.float32)
    b3c = b3[:, None].astype(jnp.float32)                             # (Cout, 1)

    x_flat = x_nchw.reshape(N, Cin, HW)   # free view: lane axis = H*W (lane-dense)

    kernel = functools.partial(_bottleneck_kernel, H=H, W=W)
    resident = lambda a: pl.BlockSpec(a.shape, lambda n: (0,) * a.ndim)

    grid_spec = pltpu.PrefetchScalarGridSpec(
        num_scalar_prefetch=0,
        grid=(N // images_per_block,),
        in_specs=[
            # Default double-buffering; sweep pipeline_mode=pl.Buffered(3) once
            # per-step compute grows at production sizes.
            pl.BlockSpec((images_per_block, Cin, HW), lambda n: (n, 0, 0)),
            resident(w1t), resident(b1c),
            resident(w2t), resident(b2c),
            resident(w3t), resident(b3c),
        ],
        out_specs=pl.BlockSpec((images_per_block, Cout, HW), lambda n: (n, 0, 0)),
    )
    out = pl.pallas_call(
        kernel,
        out_shape=jax.ShapeDtypeStruct((N, Cout, HW), x_nchw.dtype),
        grid_spec=grid_spec,
        compiler_params=pltpu.CompilerParams(
            # Batch axis is independent -> lets v7x shard it across both TCs.
            dimension_semantics=("parallel",)),
    )(x_flat, w1t, b1c, w2t, b2c, w3t, b3c)
    return out.reshape(N, Cout, H, W)


def reference_bottleneck(x, w1, w2, w3, bn1, bn2, bn3, eps=1e-5):
    """Pure-JAX NCHW reference mirroring the PyTorch module (inference BN)."""
    def bn(h, params):
        gamma, beta, mean, var = params
        inv = gamma / jnp.sqrt(var + eps)
        return ((h - mean[None, :, None, None]) * inv[None, :, None, None]
                + beta[None, :, None, None])

    def conv(h, w, pad):
        return lax.conv_general_dilated(
            h, w, window_strides=(1, 1), padding=((pad, pad), (pad, pad)),
            dimension_numbers=("NCHW", "OIHW", "NCHW"),
            precision=lax.Precision.HIGHEST)

    out = jax.nn.relu(bn(conv(x, w1, 0), bn1))
    out = jax.nn.relu(bn(conv(out, w2, 1), bn2))
    out = bn(conv(out, w3, 0), bn3)
    return jax.nn.relu(out + x)


if __name__ == "__main__":
    # Bottleneck(inplanes=32, planes=8): width=8, out = planes*4 = 32 = inplanes,
    # stride=1, groups=1, dilation=1, downsample=None.
    N, inplanes, H, W = 4, 32, 16, 16
    planes = 8
    width = planes
    out_planes = planes * 4

    key = jax.random.PRNGKey(0)
    ks = jax.random.split(key, 7)

    x = jax.random.normal(ks[0], (N, inplanes, H, W), jnp.float32)        # NCHW

    # Conv weights in PyTorch OIHW layout (bias=False, as in the module).
    w1 = 0.1 * jax.random.normal(ks[1], (width, inplanes, 1, 1), jnp.float32)
    w2 = 0.1 * jax.random.normal(ks[2], (width, width, 3, 3), jnp.float32)
    w3 = 0.1 * jax.random.normal(ks[3], (out_planes, width, 1, 1), jnp.float32)

    def bn_params(k, c):
        k1, k2, k3, k4 = jax.random.split(k, 4)
        gamma = 1.0 + 0.1 * jax.random.normal(k1, (c,), jnp.float32)
        beta = 0.1 * jax.random.normal(k2, (c,), jnp.float32)
        mean = 0.1 * jax.random.normal(k3, (c,), jnp.float32)
        var = 1.0 + 0.1 * jax.random.uniform(k4, (c,), jnp.float32)
        return gamma, beta, mean, var

    bn1 = bn_params(ks[4], width)
    bn2 = bn_params(ks[5], width)
    bn3 = bn_params(ks[6], out_planes)

    run = jax.jit(functools.partial(bottleneck_pallas, images_per_block=2))
    out = jax.block_until_ready(run(x, w1, w2, w3, bn1, bn2, bn3))

    ref = reference_bottleneck(x, w1, w2, w3, bn1, bn2, bn3)
    assert out.shape == (N, out_planes, H, W)
    err = float(jnp.max(jnp.abs(out - ref)))
    assert err < 1e-4, f"mismatch vs reference, max abs err = {err}"

    print("KERNEL_OK")
</pallas_src>

<mosaic_0001>
module attributes {stable_mosaic.version = 11 : i64} {
  func.func @_bottleneck_kernel(%arg0: i32, %arg1: memref<2x32x256xf32, #tpu.memory_space<vmem>>, %arg2: memref<8x32xf32, #tpu.memory_space<vmem>>, %arg3: memref<8x1xf32, #tpu.memory_space<vmem>>, %arg4: memref<8x72xf32, #tpu.memory_space<vmem>>, %arg5: memref<8x1xf32, #tpu.memory_space<vmem>>, %arg6: memref<32x8xf32, #tpu.memory_space<vmem>>, %arg7: memref<32x1xf32, #tpu.memory_space<vmem>>, %arg8: memref<2x32x256xf32, #tpu.memory_space<vmem>>) attributes {dimension_semantics = [#tpu.dimension_semantics<parallel>], iteration_bounds = array<i64: 2>, scalar_prefetch = 0 : i64, scratch_operands = 0 : i64, tpu.core_type = #tpu.core_type<tc>, window_params = [{transform_indices = @transform_0, window_bounds = array<i64: 2, 32, 256>}, {pipeline_mode = #tpu.pipeline_mode<synchronous>, transform_indices = @transform_1, window_bounds = array<i64: 8, 32>}, {pipeline_mode = #tpu.pipeline_mode<synchronous>, transform_indices = @transform_2, window_bounds = array<i64: 8, 1>}, {pipeline_mode = #tpu.pipeline_mode<synchronous>, transform_indices = @transform_3, window_bounds = array<i64: 8, 72>}, {pipeline_mode = #tpu.pipeline_mode<synchronous>, transform_indices = @transform_4, window_bounds = array<i64: 8, 1>}, {pipeline_mode = #tpu.pipeline_mode<synchronous>, transform_indices = @transform_5, window_bounds = array<i64: 32, 8>}, {pipeline_mode = #tpu.pipeline_mode<synchronous>, transform_indices = @transform_6, window_bounds = array<i64: 32, 1>}, {transform_indices = @transform_7, window_bounds = array<i64: 2, 32, 256>}]} {
    %0 = tpu.iota {dimensions = array<i32: 1>} : vector<1x256xi32>
    %c15_i32 = arith.constant 15 : i32
    %1 = vector.broadcast %c15_i32 : i32 to vector<1x256xi32>
    %2 = arith.andi %0, %1 : vector<1x256xi32>
    %c16_i32 = arith.constant 16 : i32
    %3 = vector.broadcast %c16_i32 : i32 to vector<1x256xi32>
    %4 = arith.cmpi sge, %0, %3 : vector<1x256xi32>
    %c1_i32 = arith.constant 1 : i32
    %5 = vector.broadcast %c1_i32 : i32 to vector<1x256xi32>
    %6 = arith.cmpi sge, %2, %5 : vector<1x256xi32>
    %7 = arith.andi %4, %6 : vector<1x256xi1>
    %c16_i32_0 = arith.constant 16 : i32
    %8 = vector.broadcast %c16_i32_0 : i32 to vector<1x256xi32>
    %9 = arith.cmpi sge, %0, %8 : vector<1x256xi32>
    %c16_i32_1 = arith.constant 16 : i32
    %10 = vector.broadcast %c16_i32_1 : i32 to vector<1x256xi32>
    %11 = arith.cmpi sge, %0, %10 : vector<1x256xi32>
    %c15_i32_2 = arith.constant 15 : i32
    %12 = vector.broadcast %c15_i32_2 : i32 to vector<1x256xi32>
    %13 = arith.cmpi slt, %2, %12 : vector<1x256xi32>
    %14 = arith.andi %11, %13 : vector<1x256xi1>
    %c1_i32_3 = arith.constant 1 : i32
    %15 = vector.broadcast %c1_i32_3 : i32 to vector<1x256xi32>
    %16 = arith.cmpi sge, %2, %15 : vector<1x256xi32>
    %c15_i32_4 = arith.constant 15 : i32
    %17 = vector.broadcast %c15_i32_4 : i32 to vector<1x256xi32>
    %18 = arith.cmpi slt, %2, %17 : vector<1x256xi32>
    %c240_i32 = arith.constant 240 : i32
    %19 = vector.broadcast %c240_i32 : i32 to vector<1x256xi32>
    %20 = arith.cmpi slt, %0, %19 : vector<1x256xi32>
    %c1_i32_5 = arith.constant 1 : i32
    %21 = vector.broadcast %c1_i32_5 : i32 to vector<1x256xi32>
    %22 = arith.cmpi sge, %2, %21 : vector<1x256xi32>
    %23 = arith.andi %20, %22 : vector<1x256xi1>
    %c240_i32_6 = arith.constant 240 : i32
    %24 = vector.broadcast %c240_i32_6 : i32 to vector<1x256xi32>
    %25 = arith.cmpi slt, %0, %24 : vector<1x256xi32>
    %c240_i32_7 = arith.constant 240 : i32
    %26 = vector.broadcast %c240_i32_7 : i32 to vector<1x256xi32>
    %27 = arith.cmpi slt, %0, %26 : vector<1x256xi32>
    %c15_i32_8 = arith.constant 15 : i32
    %28 = vector.broadcast %c15_i32_8 : i32 to vector<1x256xi32>
    %29 = arith.cmpi slt, %2, %28 : vector<1x256xi32>
    %30 = arith.andi %27, %29 : vector<1x256xi1>
    %c0 = arith.constant 0 : index
    %c0_9 = arith.constant 0 : index
    %c0_10 = arith.constant 0 : index
    %31 = vector.load %arg1[%c0, %c0_9, %c0_10] : memref<2x32x256xf32, #tpu.memory_space<vmem>>, vector<1x32x256xf32>
    %32 = vector.shape_cast %31 : vector<1x32x256xf32> to vector<32x256xf32>
    %c0_11 = arith.constant 0 : index
    %c0_12 = arith.constant 0 : index
    %33 = vector.load %arg2[%c0_11, %c0_12] : memref<8x32xf32, #tpu.memory_space<vmem>>, vector<8x32xf32>
    %cst = arith.constant dense<0.000000e+00> : vector<8x256xf32>
    %34 = tpu.matmul %33, %32, %cst {dimension_numbers = #tpu.dot_dimension_numbers<[1], [0], [0], [1], [0, 0, 1, 1], [], []>} : vector<8x32xf32>, vector<32x256xf32>, vector<8x256xf32> -> vector<8x256xf32>
    %c0_13 = arith.constant 0 : index
    %c0_14 = arith.constant 0 : index
    %35 = vector.load %arg3[%c0_13, %c0_14] : memref<8x1xf32, #tpu.memory_space<vmem>>, vector<8x1xf32>
    %36 = vector.broadcast %35 : vector<8x1xf32> to vector<8x256xf32>
    %37 = arith.addf %34, %36 : vector<8x256xf32>
    %cst_15 = arith.constant 0.000000e+00 : f32
    %38 = vector.broadcast %cst_15 : f32 to vector<8x256xf32>
    %39 = arith.maximumf %37, %38 : vector<8x256xf32>
    %c17_i32 = arith.constant 17 : i32
    %40 = tpu.dynamic_rotate %39 by %c17_i32 dim 1 : vector<8x256xf32>, i32 -> vector<8x256xf32>
    %cst_16 = arith.constant 0.000000e+00 : f32
    %41 = vector.shape_cast %7 : vector<1x256xi1> to vector<1x256xi1>
    %42 = vector.broadcast %41 : vector<1x256xi1> to vector<8x256xi1>
    %43 = vector.broadcast %cst_16 : f32 to vector<8x256xf32>
    %44 = arith.select %42, %40, %43 : vector<8x256xi1>, vector<8x256xf32>
    %c16_i32_17 = arith.constant 16 : i32
    %45 = tpu.dynamic_rotate %39 by %c16_i32_17 dim 1 : vector<8x256xf32>, i32 -> vector<8x256xf32>
    %cst_18 = arith.constant 0.000000e+00 : f32
    %46 = vector.shape_cast %9 : vector<1x256xi1> to vector<1x256xi1>
    %47 = vector.broadcast %46 : vector<1x256xi1> to vector<8x256xi1>
    %48 = vector.broadcast %cst_18 : f32 to vector<8x256xf32>
    %49 = arith.select %47, %45, %48 : vector<8x256xi1>, vector<8x256xf32>
    %c15_i32_19 = arith.constant 15 : i32
    %50 = tpu.dynamic_rotate %39 by %c15_i32_19 dim 1 : vector<8x256xf32>, i32 -> vector<8x256xf32>
    %cst_20 = arith.constant 0.000000e+00 : f32
    %51 = vector.shape_cast %14 : vector<1x256xi1> to vector<1x256xi1>
    %52 = vector.broadcast %51 : vector<1x256xi1> to vector<8x256xi1>
    %53 = vector.broadcast %cst_20 : f32 to vector<8x256xf32>
    %54 = arith.select %52, %50, %53 : vector<8x256xi1>, vector<8x256xf32>
    %c1_i32_21 = arith.constant 1 : i32
    %55 = tpu.dynamic_rotate %39 by %c1_i32_21 dim 1 : vector<8x256xf32>, i32 -> vector<8x256xf32>
    %cst_22 = arith.constant 0.000000e+00 : f32
    %56 = vector.shape_cast %16 : vector<1x256xi1> to vector<1x256xi1>
    %57 = vector.broadcast %56 : vector<1x256xi1> to vector<8x256xi1>
    %58 = vector.broadcast %cst_22 : f32 to vector<8x256xf32>
    %59 = arith.select %57, %55, %58 : vector<8x256xi1>, vector<8x256xf32>
    %c255_i32 = arith.constant 255 : i32
    %60 = tpu.dynamic_rotate %39 by %c255_i32 dim 1 : vector<8x256xf32>, i32 -> vector<8x256xf32>
    %cst_23 = arith.constant 0.000000e+00 : f32
    %61 = vector.shape_cast %18 : vector<1x256xi1> to vector<1x256xi1>
    %62 = vector.broadcast %61 : vector<1x256xi1> to vector<8x256xi1>
    %63 = vector.broadcast %cst_23 : f32 to vector<8x256xf32>
    %64 = arith.select %62, %60, %63 : vector<8x256xi1>, vector<8x256xf32>
    %c241_i32 = arith.constant 241 : i32
    %65 = tpu.dynamic_rotate %39 by %c241_i32 dim 1 : vector<8x256xf32>, i32 -> vector<8x256xf32>
    %cst_24 = arith.constant 0.000000e+00 : f32
    %66 = vector.shape_cast %23 : vector<1x256xi1> to vector<1x256xi1>
    %67 = vector.broadcast %66 : vector<1x256xi1> to vector<8x256xi1>
    %68 = vector.broadcast %cst_24 : f32 to vector<8x256xf32>
    %69 = arith.select %67, %65, %68 : vector<8x256xi1>, vector<8x256xf32>
    %c240_i32_25 = arith.constant 240 : i32
    %70 = tpu.dynamic_rotate %39 by %c240_i32_25 dim 1 : vector<8x256xf32>, i32 -> vector<8x256xf32>
    %cst_26 = arith.constant 0.000000e+00 : f32
    %71 = vector.shape_cast %25 : vector<1x256xi1> to vector<1x256xi1>
    %72 = vector.broadcast %71 : vector<1x256xi1> to vector<8x256xi1>
    %73 = vector.broadcast %cst_26 : f32 to vector<8x256xf32>
    %74 = arith.select %72, %70, %73 : vector<8x256xi1>, vector<8x256xf32>
    %c239_i32 = arith.constant 239 : i32
    %75 = tpu.dynamic_rotate %39 by %c239_i32 dim 1 : vector<8x256xf32>, i32 -> vector<8x256xf32>
    %cst_27 = arith.constant 0.000000e+00 : f32
    %76 = vector.shape_cast %30 : vector<1x256xi1> to vector<1x256xi1>
    %77 = vector.broadcast %76 : vector<1x256xi1> to vector<8x256xi1>
    %78 = vector.broadcast %cst_27 : f32 to vector<8x256xf32>
    %79 = arith.select %77, %75, %78 : vector<8x256xi1>, vector<8x256xf32>
    %80 = tpu.concatenate %44, %49, %54, %59, %39, %64, %69, %74, %79 in 0 : vector<8x256xf32>, vector<8x256xf32>, vector<8x256xf32>, vector<8x256xf32>, vector<8x256xf32>, vector<8x256xf32>, vector<8x256xf32>, vector<8x256xf32>, vector<8x256xf32> -> vector<72x256xf32>
    %c0_28 = arith.constant 0 : index
    %c0_29 = arith.constant 0 : index
    %81 = vector.load %arg4[%c0_28, %c0_29] : memref<8x72xf32, #tpu.memory_space<vmem>>, vector<8x72xf32>
    %cst_30 = arith.constant dense<0.000000e+00> : vector<8x256xf32>
    %82 = tpu.matmul %81, %80, %cst_30 {dimension_numbers = #tpu.dot_dimension_numbers<[1], [0], [0], [1], [0, 0, 1, 1], [], []>} : vector<8x72xf32>, vector<72x256xf32>, vector<8x256xf32> -> vector<8x256xf32>
    %c0_31 = arith.constant 0 : index
    %c0_32 = arith.constant 0 : index
    %83 = vector.load %arg5[%c0_31, %c0_32] : memref<8x1xf32, #tpu.memory_space<vmem>>, vector<8x1xf32>
    %84 = vector.broadcast %83 : vector<8x1xf32> to vector<8x256xf32>
    %85 = arith.addf %82, %84 : vector<8x256xf32>
    %cst_33 = arith.constant 0.000000e+00 : f32
    %86 = vector.broadcast %cst_33 : f32 to vector<8x256xf32>
    %87 = arith.maximumf %85, %86 : vector<8x256xf32>
    %c0_34 = arith.constant 0 : index
    %c0_35 = arith.constant 0 : index
    %88 = vector.load %arg6[%c0_34, %c0_35] : memref<32x8xf32, #tpu.memory_space<vmem>>, vector<32x8xf32>
    %cst_36 = arith.constant dense<0.000000e+00> : vector<32x256xf32>
    %89 = tpu.matmul %88, %87, %cst_36 {dimension_numbers = #tpu.dot_dimension_numbers<[1], [0], [0], [1], [0, 0, 1, 1], [], []>} : vector<32x8xf32>, vector<8x256xf32>, vector<32x256xf32> -> vector<32x256xf32>
    %c0_37 = arith.constant 0 : index
    %c0_38 = arith.constant 0 : index
    %90 = vector.load %arg7[%c0_37, %c0_38] : memref<32x1xf32, #tpu.memory_space<vmem>>, vector<32x1xf32>
    %91 = vector.broadcast %90 : vector<32x1xf32> to vector<32x256xf32>
    %92 = arith.addf %89, %91 : vector<32x256xf32>
    %c0_39 = arith.constant 0 : index
    %c0_40 = arith.constant 0 : index
    %c0_41 = arith.constant 0 : index
    %93 = vector.load %arg1[%c0_39, %c0_40, %c0_41] : memref<2x32x256xf32, #tpu.memory_space<vmem>>, vector<1x32x256xf32>
    %94 = vector.shape_cast %93 : vector<1x32x256xf32> to vector<32x256xf32>
    %95 = arith.addf %92, %94 : vector<32x256xf32>
    %cst_42 = arith.constant 0.000000e+00 : f32
    %96 = vector.broadcast %cst_42 : f32 to vector<32x256xf32>
    %97 = arith.maximumf %95, %96 : vector<32x256xf32>
    %c0_43 = arith.constant 0 : index
    %c0_44 = arith.constant 0 : index
    %c0_45 = arith.constant 0 : index
    %98 = vector.load %arg8[%c0_43, %c0_44, %c0_45] : memref<2x32x256xf32, #tpu.memory_space<vmem>>, vector<1x32x256xf32>
    %99 = vector.shape_cast %98 : vector<1x32x256xf32> to vector<32x256xf32>
    %100 = vector.shape_cast %97 : vector<32x256xf32> to vector<1x32x256xf32>
    tpu.vector_store %arg8[%c0_43, %c0_44, %c0_45], %100 {strides = array<i32>} : memref<2x32x256xf32, #tpu.memory_space<vmem>>, vector<1x32x256xf32>,
    %c1 = arith.constant 1 : index
    %c0_46 = arith.constant 0 : index
    %c0_47 = arith.constant 0 : index
    %101 = vector.load %arg1[%c1, %c0_46, %c0_47] : memref<2x32x256xf32, #tpu.memory_space<vmem>>, vector<1x32x256xf32>
    %102 = vector.shape_cast %101 : vector<1x32x256xf32> to vector<32x256xf32>
    %c0_48 = arith.constant 0 : index
    %c0_49 = arith.constant 0 : index
    %103 = vector.load %arg2[%c0_48, %c0_49] : memref<8x32xf32, #tpu.memory_space<vmem>>, vector<8x32xf32>
    %cst_50 = arith.constant dense<0.000000e+00> : vector<8x256xf32>
    %104 = tpu.matmul %103, %102, %cst_50 {dimension_numbers = #tpu.dot_dimension_numbers<[1], [0], [0], [1], [0, 0, 1, 1], [], []>} : vector<8x32xf32>, vector<32x256xf32>, vector<8x256xf32> -> vector<8x256xf32>
    %c0_51 = arith.constant 0 : index
    %c0_52 = arith.constant 0 : index
    %105 = vector.load %arg3[%c0_51, %c0_52] : memref<8x1xf32, #tpu.memory_space<vmem>>, vector<8x1xf32>
    %106 = vector.broadcast %105 : vector<8x1xf32> to vector<8x256xf32>
    %107 = arith.addf %104, %106 : vector<8x256xf32>
    %cst_53 = arith.constant 0.000000e+00 : f32
    %108 = vector.broadcast %cst_53 : f32 to vector<8x256xf32>
    %109 = arith.maximumf %107, %108 : vector<8x256xf32>
    %c17_i32_54 = arith.constant 17 : i32
    %110 = tpu.dynamic_rotate %109 by %c17_i32_54 dim 1 : vector<8x256xf32>, i32 -> vector<8x256xf32>
    %cst_55 = arith.constant 0.000000e+00 : f32
    %111 = vector.shape_cast %7 : vector<1x256xi1> to vector<1x256xi1>
    %112 = vector.broadcast %111 : vector<1x256xi1> to vector<8x256xi1>
    %113 = vector.broadcast %cst_55 : f32 to vector<8x256xf32>
    %114 = arith.select %112, %110, %113 : vector<8x256xi1>, vector<8x256xf32>
    %c16_i32_56 = arith.constant 16 : i32
    %115 = tpu.dynamic_rotate %109 by %c16_i32_56 dim 1 : vector<8x256xf32>, i32 -> vector<8x256xf32>
    %cst_57 = arith.constant 0.000000e+00 : f32
    %116 = vector.shape_cast %9 : vector<1x256xi1> to vector<1x256xi1>
    %117 = vector.broadcast %116 : vector<1x256xi1> to vector<8x256xi1>
    %118 = vector.broadcast %cst_57 : f32 to vector<8x256xf32>
    %119 = arith.select %117, %115, %118 : vector<8x256xi1>, vector<8x256xf32>
    %c15_i32_58 = arith.constant 15 : i32
    %120 = tpu.dynamic_rotate %109 by %c15_i32_58 dim 1 : vector<8x256xf32>, i32 -> vector<8x256xf32>
    %cst_59 = arith.constant 0.000000e+00 : f32
    %121 = vector.shape_cast %14 : vector<1x256xi1> to vector<1x256xi1>
    %122 = vector.broadcast %121 : vector<1x256xi1> to vector<8x256xi1>
    %123 = vector.broadcast %cst_59 : f32 to vector<8x256xf32>
    %124 = arith.select %122, %120, %123 : vector<8x256xi1>, vector<8x256xf32>
    %c1_i32_60 = arith.constant 1 : i32
    %125 = tpu.dynamic_rotate %109 by %c1_i32_60 dim 1 : vector<8x256xf32>, i32 -> vector<8x256xf32>
    %cst_61 = arith.constant 0.000000e+00 : f32
    %126 = vector.shape_cast %16 : vector<1x256xi1> to vector<1x256xi1>
    %127 = vector.broadcast %126 : vector<1x256xi1> to vector<8x256xi1>
    %128 = vector.broadcast %cst_61 : f32 to vector<8x256xf32>
    %129 = arith.select %127, %125, %128 : vector<8x256xi1>, vector<8x256xf32>
    %c255_i32_62 = arith.constant 255 : i32
    %130 = tpu.dynamic_rotate %109 by %c255_i32_62 dim 1 : vector<8x256xf32>, i32 -> vector<8x256xf32>
    %cst_63 = arith.constant 0.000000e+00 : f32
    %131 = vector.shape_cast %18 : vector<1x256xi1> to vector<1x256xi1>
    %132 = vector.broadcast %131 : vector<1x256xi1> to vector<8x256xi1>
    %133 = vector.broadcast %cst_63 : f32 to vector<8x256xf32>
    %134 = arith.select %132, %130, %133 : vector<8x256xi1>, vector<8x256xf32>
    %c241_i32_64 = arith.constant 241 : i32
    %135 = tpu.dynamic_rotate %109 by %c241_i32_64 dim 1 : vector<8x256xf32>, i32 -> vector<8x256xf32>
    %cst_65 = arith.constant 0.000000e+00 : f32
    %136 = vector.shape_cast %23 : vector<1x256xi1> to vector<1x256xi1>
    %137 = vector.broadcast %136 : vector<1x256xi1> to vector<8x256xi1>
    %138 = vector.broadcast %cst_65 : f32 to vector<8x256xf32>
    %139 = arith.select %137, %135, %138 : vector<8x256xi1>, vector<8x256xf32>
    %c240_i32_66 = arith.constant 240 : i32
    %140 = tpu.dynamic_rotate %109 by %c240_i32_66 dim 1 : vector<8x256xf32>, i32 -> vector<8x256xf32>
    %cst_67 = arith.constant 0.000000e+00 : f32
    %141 = vector.shape_cast %25 : vector<1x256xi1> to vector<1x256xi1>
    %142 = vector.broadcast %141 : vector<1x256xi1> to vector<8x256xi1>
    %143 = vector.broadcast %cst_67 : f32 to vector<8x256xf32>
    %144 = arith.select %142, %140, %143 : vector<8x256xi1>, vector<8x256xf32>
    %c239_i32_68 = arith.constant 239 : i32
    %145 = tpu.dynamic_rotate %109 by %c239_i32_68 dim 1 : vector<8x256xf32>, i32 -> vector<8x256xf32>
    %cst_69 = arith.constant 0.000000e+00 : f32
    %146 = vector.shape_cast %30 : vector<1x256xi1> to vector<1x256xi1>
    %147 = vector.broadcast %146 : vector<1x256xi1> to vector<8x256xi1>
    %148 = vector.broadcast %cst_69 : f32 to vector<8x256xf32>
    %149 = arith.select %147, %145, %148 : vector<8x256xi1>, vector<8x256xf32>
    %150 = tpu.concatenate %114, %119, %124, %129, %109, %134, %139, %144, %149 in 0 : vector<8x256xf32>, vector<8x256xf32>, vector<8x256xf32>, vector<8x256xf32>, vector<8x256xf32>, vector<8x256xf32>, vector<8x256xf32>, vector<8x256xf32>, vector<8x256xf32> -> vector<72x256xf32>
    %c0_70 = arith.constant 0 : index
    %c0_71 = arith.constant 0 : index
    %151 = vector.load %arg4[%c0_70, %c0_71] : memref<8x72xf32, #tpu.memory_space<vmem>>, vector<8x72xf32>
    %cst_72 = arith.constant dense<0.000000e+00> : vector<8x256xf32>
    %152 = tpu.matmul %151, %150, %cst_72 {dimension_numbers = #tpu.dot_dimension_numbers<[1], [0], [0], [1], [0, 0, 1, 1], [], []>} : vector<8x72xf32>, vector<72x256xf32>, vector<8x256xf32> -> vector<8x256xf32>
    %c0_73 = arith.constant 0 : index
    %c0_74 = arith.constant 0 : index
    %153 = vector.load %arg5[%c0_73, %c0_74] : memref<8x1xf32, #tpu.memory_space<vmem>>, vector<8x1xf32>
    %154 = vector.broadcast %153 : vector<8x1xf32> to vector<8x256xf32>
    %155 = arith.addf %152, %154 : vector<8x256xf32>
    %cst_75 = arith.constant 0.000000e+00 : f32
    %156 = vector.broadcast %cst_75 : f32 to vector<8x256xf32>
    %157 = arith.maximumf %155, %156 : vector<8x256xf32>
    %c0_76 = arith.constant 0 : index
    %c0_77 = arith.constant 0 : index
    %158 = vector.load %arg6[%c0_76, %c0_77] : memref<32x8xf32, #tpu.memory_space<vmem>>, vector<32x8xf32>
    %cst_78 = arith.constant dense<0.000000e+00> : vector<32x256xf32>
    %159 = tpu.matmul %158, %157, %cst_78 {dimension_numbers = #tpu.dot_dimension_numbers<[1], [0], [0], [1], [0, 0, 1, 1], [], []>} : vector<32x8xf32>, vector<8x256xf32>, vector<32x256xf32> -> vector<32x256xf32>
    %c0_79 = arith.constant 0 : index
    %c0_80 = arith.constant 0 : index
    %160 = vector.load %arg7[%c0_79, %c0_80] : memref<32x1xf32, #tpu.memory_space<vmem>>, vector<32x1xf32>
    %161 = vector.broadcast %160 : vector<32x1xf32> to vector<32x256xf32>
    %162 = arith.addf %159, %161 : vector<32x256xf32>
    %c1_81 = arith.constant 1 : index
    %c0_82 = arith.constant 0 : index
    %c0_83 = arith.constant 0 : index
    %163 = vector.load %arg1[%c1_81, %c0_82, %c0_83] : memref<2x32x256xf32, #tpu.memory_space<vmem>>, vector<1x32x256xf32>
    %164 = vector.shape_cast %163 : vector<1x32x256xf32> to vector<32x256xf32>
    %165 = arith.addf %162, %164 : vector<32x256xf32>
    %cst_84 = arith.constant 0.000000e+00 : f32
    %166 = vector.broadcast %cst_84 : f32 to vector<32x256xf32>
    %167 = arith.maximumf %165, %166 : vector<32x256xf32>
    %c1_85 = arith.constant 1 : index
    %c0_86 = arith.constant 0 : index
    %c0_87 = arith.constant 0 : index
    %168 = vector.load %arg8[%c1_85, %c0_86, %c0_87] : memref<2x32x256xf32, #tpu.memory_space<vmem>>, vector<1x32x256xf32>
    %169 = vector.shape_cast %168 : vector<1x32x256xf32> to vector<32x256xf32>
    %170 = vector.shape_cast %167 : vector<32x256xf32> to vector<1x32x256xf32>
    tpu.vector_store %arg8[%c1_85, %c0_86, %c0_87], %170 {strides = array<i32>} : memref<2x32x256xf32, #tpu.memory_space<vmem>>, vector<1x32x256xf32>,
    return
  }
  func.func @transform_0(%arg0: i32) -> (i32, i32, i32) {
    %c0_i32 = arith.constant 0 : i32
    %c0_i32_0 = arith.constant 0 : i32
    %c0_i32_1 = arith.constant 0 : i32
    return %arg0, %c0_i32, %c0_i32_0 : i32, i32, i32
  }
  func.func @transform_1(%arg0: i32) -> (i32, i32) {
    %c0_i32 = arith.constant 0 : i32
    %c0_i32_0 = arith.constant 0 : i32
    %c0_i32_1 = arith.constant 0 : i32
    return %c0_i32, %c0_i32_0 : i32, i32
  }
  func.func @transform_2(%arg0: i32) -> (i32, i32) {
    %c0_i32 = arith.constant 0 : i32
    %c0_i32_0 = arith.constant 0 : i32
    %c0_i32_1 = arith.constant 0 : i32
    return %c0_i32, %c0_i32_0 : i32, i32
  }
  func.func @transform_3(%arg0: i32) -> (i32, i32) {
    %c0_i32 = arith.constant 0 : i32
    %c0_i32_0 = arith.constant 0 : i32
    %c0_i32_1 = arith.constant 0 : i32
    return %c0_i32, %c0_i32_0 : i32, i32
  }
  func.func @transform_4(%arg0: i32) -> (i32, i32) {
    %c0_i32 = arith.constant 0 : i32
    %c0_i32_0 = arith.constant 0 : i32
    %c0_i32_1 = arith.constant 0 : i32
    return %c0_i32, %c0_i32_0 : i32, i32
  }
  func.func @transform_5(%arg0: i32) -> (i32, i32) {
    %c0_i32 = arith.constant 0 : i32
    %c0_i32_0 = arith.constant 0 : i32
    %c0_i32_1 = arith.constant 0 : i32
    return %c0_i32, %c0_i32_0 : i32, i32
  }
  func.func @transform_6(%arg0: i32) -> (i32, i32) {
    %c0_i32 = arith.constant 0 : i32
    %c0_i32_0 = arith.constant 0 : i32
    %c0_i32_1 = arith.constant 0 : i32
    return %c0_i32, %c0_i32_0 : i32, i32
  }
  func.func @transform_7(%arg0: i32) -> (i32, i32, i32) {
    %c0_i32 = arith.constant 0 : i32
    %c0_i32_0 = arith.constant 0 : i32
    %c0_i32_1 = arith.constant 0 : i32
    return %arg0, %c0_i32, %c0_i32_0 : i32, i32, i32
  }
}

</mosaic_0001>

<llo_original>
// kernel: bottleneck_pallas.1
$region0: #{bottleneck_pallas.1}
  #allocation0 [shape = 'u32[]', space=smem, size = 0x4, offset = 0x4, fixed_abs, tag = 'smem constant byte address 0x4 - core index']
  #allocation1 [shape = 'u32[144,128]{1,0:T(1,128)}', space=vmem, size = 0x12000, scoped, tag = 'internal scratch']
  %s0 = inlined_call_operand.vmem [shape: f32[4,32,256], index: 0, kind: input, shape index: {}]
  %s1 = inlined_call_operand.vmem [shape: f32[8,32], index: 1, kind: input, shape index: {}]
  %s2 = inlined_call_operand.vmem [shape: f32[8,1], index: 2, kind: input, shape index: {}]
  %s3 = inlined_call_operand.vmem [shape: f32[8,72], index: 3, kind: input, shape index: {}]
  %s4 = inlined_call_operand.vmem [shape: f32[8,1], index: 4, kind: input, shape index: {}]
  %s5 = inlined_call_operand.vmem [shape: f32[32,8], index: 5, kind: input, shape index: {}]
  %s6 = inlined_call_operand.vmem [shape: f32[32,1], index: 6, kind: input, shape index: {}]
  %s7 = inlined_call_operand.vmem [shape: f32[4,32,256], index: 7, kind: output, shape index: {}]
  %s8 = sld [smem:[#allocation0]]
  $region61: #{bottleneck_pallas.1} parent=0
    _
  %s10 = ssub.s32 1, %s8
  %s11 = scalar_select 0, %s10, %s8
  loop: start=0, step=1, limit=4
  $region2: #{bottleneck_pallas.1} parent=0 // loop_pre_header
    _
  $region3: #{bottleneck_pallas.1} parent=0 // loop_header
    %s13 = sphi 0, %s17
    %p14 = scmp.ge.s32.totalorder %s13, 4
    %s23 = sphi 0, %s25
    %s26 = sphi 0, %s23
    %s27 = sphi 0, %s26
    %s43 = sphi 0, %s27
    %s47 = sphi 0, %s47
    %s49 = sphi 0, %s47
    %s50 = sphi 0, %s49
    %s64 = sphi 0, %s50
    %s68 = sphi 0, %s68
    %s70 = sphi 0, %s68
    %s71 = sphi 0, %s70
    %s85 = sphi 0, %s71
    %s89 = sphi 0, %s89
    %s91 = sphi 0, %s89
    %s92 = sphi 0, %s91
    %s106 = sphi 0, %s92
    %s110 = sphi 0, %s110
    %s112 = sphi 0, %s110
    %s113 = sphi 0, %s112
    %s127 = sphi 0, %s113
    %s131 = sphi 0, %s131
    %s133 = sphi 0, %s131
    %s134 = sphi 0, %s133
    %s148 = sphi 0, %s134
    %s152 = sphi 0, %s152
    %s154 = sphi 0, %s152
    %s155 = sphi 0, %s154
    %s169 = sphi 0, %s155
    %s175 = sphi 0, %s177
    %s178 = sphi 0, %s175
    %s179 = sphi 0, %s178
    %s195 = sphi 0, %s179
  $region4: #{bottleneck_pallas.1} parent=0 // loop_header_branch
    %16 = sbr.rel (%p14) target = $region8
  $region5: #{bottleneck_pallas.1} parent=0 // loop_body
    %s18 = ssub.s32 %s13, 1
    %s19 = ssub.s32 %s13, 2
    %s20 = sadd.s32 %s13, 1
    %s21 = ssub.s32 %s13, %s20
    %p22 = scmp.eq.s32.totalorder %s21, 0
    %s24 = sadd.s32 %s23, 1
    %s25 = scalar_select %p22, %s23, %s24
    %p28 = pneg %p22
    %p29 = scmp.eq.s32.totalorder %s13, 1
    %p30 = por %p28, %p29
    %p31 = scmp.ne.s32.totalorder %s23, %s26
    %p32 = scmp.eq.s32.totalorder %s13, 0
    %p33 = por %p31, %p32
    %p34 = scmp.ne.s32.totalorder %s23, %s26
    %p35 = scmp.eq.s32.totalorder %s18, 1
    %p36 = por %p34, %p35
    %p37 = scmp.ne.s32.totalorder %s26, %s27
    %p38 = scmp.eq.s32.totalorder %s18, 0
    %p39 = por %p37, %p38
    %p40 = scmp.ne.s32.totalorder %s26, %s27
    %p41 = scmp.eq.s32.totalorder %s19, 1
    %p42 = por %p40, %p41
    %p44 = scmp.ne.s32.totalorder %s27, %s43
    %p45 = scmp.eq.s32.totalorder %s19, 0
    %p46 = por %p44, %p45
    %s48 = sadd.s32 %s47, 1
    %p51 = scmp.eq.s32.totalorder %s13, 1
    %p52 = scmp.ne.s32.totalorder %s47, %s49
    %p53 = scmp.eq.s32.totalorder %s13, 0
    %p54 = por %p52, %p53
    %p55 = scmp.ne.s32.totalorder %s47, %s49
    %p56 = scmp.eq.s32.totalorder %s18, 1
    %p57 = por %p55, %p56
    %p58 = scmp.ne.s32.totalorder %s49, %s50
    %p59 = scmp.eq.s32.totalorder %s18, 0
    %p60 = por %p58, %p59
    %p61 = scmp.ne.s32.totalorder %s49, %s50
    %p62 = scmp.eq.s32.totalorder %s19, 1
    %p63 = por %p61, %p62
    %p65 = scmp.ne.s32.totalorder %s50, %s64
    %p66 = scmp.eq.s32.totalorder %s19, 0
    %p67 = por %p65, %p66
    %s69 = sadd.s32 %s68, 1
    %p72 = scmp.eq.s32.totalorder %s13, 1
    %p73 = scmp.ne.s32.totalorder %s68, %s70
    %p74 = scmp.eq.s32.totalorder %s13, 0
    %p75 = por %p73, %p74
    %p76 = scmp.ne.s32.totalorder %s68, %s70
    %p77 = scmp.eq.s32.totalorder %s18, 1
    %p78 = por %p76, %p77
    %p79 = scmp.ne.s32.totalorder %s70, %s71
    %p80 = scmp.eq.s32.totalorder %s18, 0
    %p81 = por %p79, %p80
    %p82 = scmp.ne.s32.totalorder %s70, %s71
    %p83 = scmp.eq.s32.totalorder %s19, 1
    %p84 = por %p82, %p83
    %p86 = scmp.ne.s32.totalorder %s71, %s85
    %p87 = scmp.eq.s32.totalorder %s19, 0
    %p88 = por %p86, %p87
    %s90 = sadd.s32 %s89, 1
    %p93 = scmp.eq.s32.totalorder %s13, 1
    %p94 = scmp.ne.s32.totalorder %s89, %s91
    %p95 = scmp.eq.s32.totalorder %s13, 0
    %p96 = por %p94, %p95
    %p97 = scmp.ne.s32.totalorder %s89, %s91
    %p98 = scmp.eq.s32.totalorder %s18, 1
    %p99 = por %p97, %p98
    %p100 = scmp.ne.s32.totalorder %s91, %s92
    %p101 = scmp.eq.s32.totalorder %s18, 0
    %p102 = por %p100, %p101
    %p103 = scmp.ne.s32.totalorder %s91, %s92
    %p104 = scmp.eq.s32.totalorder %s19, 1
    %p105 = por %p103, %p104
    %p107 = scmp.ne.s32.totalorder %s92, %s106
    %p108 = scmp.eq.s32.totalorder %s19, 0
    %p109 = por %p107, %p108
    %s111 = sadd.s32 %s110, 1
    %p114 = scmp.eq.s32.totalorder %s13, 1
    %p115 = scmp.ne.s32.totalorder %s110, %s112
    %p116 = scmp.eq.s32.totalorder %s13, 0
    %p117 = por %p115, %p116
    %p118 = scmp.ne.s32.totalorder %s110, %s112
    %p119 = scmp.eq.s32.totalorder %s18, 1
    %p120 = por %p118, %p119
    %p121 = scmp.ne.s32.totalorder %s112, %s113
    %p122 = scmp.eq.s32.totalorder %s18, 0
    %p123 = por %p121, %p122
    %p124 = scmp.ne.s32.totalorder %s112, %s113
    %p125 = scmp.eq.s32.totalorder %s19, 1
    %p126 = por %p124, %p125
    %p128 = scmp.ne.s32.totalorder %s113, %s127
    %p129 = scmp.eq.s32.totalorder %s19, 0
    %p130 = por %p128, %p129
    %s132 = sadd.s32 %s131, 1
    %p135 = scmp.eq.s32.totalorder %s13, 1
    %p136 = scmp.ne.s32.totalorder %s131, %s133
    %p137 = scmp.eq.s32.totalorder %s13, 0
    %p138 = por %p136, %p137
    %p139 = scmp.ne.s32.totalorder %s131, %s133
    %p140 = scmp.eq.s32.totalorder %s18, 1
    %p141 = por %p139, %p140
    %p142 = scmp.ne.s32.totalorder %s133, %s134
    %p143 = scmp.eq.s32.totalorder %s18, 0
    %p144 = por %p142, %p143
    %p145 = scmp.ne.s32.totalorder %s133, %s134
    %p146 = scmp.eq.s32.totalorder %s19, 1
    %p147 = por %p145, %p146
    %p149 = scmp.ne.s32.totalorder %s134, %s148
    %p150 = scmp.eq.s32.totalorder %s19, 0
    %p151 = por %p149, %p150
    %s153 = sadd.s32 %s152, 1
    %p156 = scmp.eq.s32.totalorder %s13, 1
    %p157 = scmp.ne.s32.totalorder %s152, %s154
    %p158 = scmp.eq.s32.totalorder %s13, 0
    %p159 = por %p157, %p158
    %p160 = scmp.ne.s32.totalorder %s152, %s154
    %p161 = scmp.eq.s32.totalorder %s18, 1
    %p162 = por %p160, %p161
    %p163 = scmp.ne.s32.totalorder %s154, %s155
    %p164 = scmp.eq.s32.totalorder %s18, 0
    %p165 = por %p163, %p164
    %p166 = scmp.ne.s32.totalorder %s154, %s155
    %p167 = scmp.eq.s32.totalorder %s19, 1
    %p168 = por %p166, %p167
    %p170 = scmp.ne.s32.totalorder %s155, %s169
    %p171 = scmp.eq.s32.totalorder %s19, 0
    %p172 = por %p170, %p171
    %s173 = ssub.s32 %s13, %s20
    %p174 = scmp.eq.s32.totalorder %s173, 0
    %s176 = sadd.s32 %s175, 1
    %s177 = scalar_select %p174, %s175, %s176
    %p180 = pneg %p174
    %p181 = scmp.eq.s32.totalorder %s13, 1
    %p182 = por %p180, %p181
    %p183 = scmp.ne.s32.totalorder %s175, %s178
    %p184 = scmp.eq.s32.totalorder %s13, 0
    %p185 = por %p183, %p184
    %p186 = scmp.ne.s32.totalorder %s175, %s178
    %p187 = scmp.eq.s32.totalorder %s18, 1
    %p188 = por %p186, %p187
    %p189 = scmp.ne.s32.totalorder %s178, %s179
    %p190 = scmp.eq.s32.totalorder %s18, 0
    %p191 = por %p189, %p190
    %p192 = scmp.ne.s32.totalorder %s178, %s179
    %p193 = scmp.eq.s32.totalorder %s19, 1
    %p194 = por %p192, %p193
    %p196 = scmp.ne.s32.totalorder %s179, %s195
    %p197 = scmp.eq.s32.totalorder %s19, 0
    %p198 = por %p196, %p197
    %p199 = scmp.le.s32.totalorder 1, %s13
    %p200 = scmp.lt.s32.totalorder %s13, 3
    %p201 = pnand %p199, %p200
    %p202 = pneg %p201
    // Predicated region
    $region9: #{bottleneck_pallas.1} parent=5 // pred_check
      _
    $region10: #{bottleneck_pallas.1} parent=5 // pred_check_branch
      %204 = sbr.rel (%p201) target = $region12
    $region11: #{bottleneck_pallas.1} parent=5 // pred_region
      %s205 = ssub.s32 %s13, 1
      // Predicated region
      $region13: #{bottleneck_pallas.1} parent=11 // pred_check
        %p206 = pneg %p60
      $region14: #{bottleneck_pallas.1} parent=11 // pred_check_branch
        %208 = sbr.rel (%p206) target = $region16
      $region15: #{bottleneck_pallas.1} parent=11 // pred_region
        _
      $region16: #{bottleneck_pallas.1} parent=11 // pred_fallthru
        _
      // Predicated region
      $region17: #{bottleneck_pallas.1} parent=11 // pred_check
        %p209 = pneg %p81
      $region18: #{bottleneck_pallas.1} parent=11 // pred_check_branch
        %211 = sbr.rel (%p209) target = $region20
      $region19: #{bottleneck_pallas.1} parent=11 // pred_region
        _
      $region20: #{bottleneck_pallas.1} parent=11 // pred_fallthru
        _
      // Predicated region
      $region21: #{bottleneck_pallas.1} parent=11 // pred_check
        %p212 = pneg %p102
      $region22: #{bottleneck_pallas.1} parent=11 // pred_check_branch
        %214 = sbr.rel (%p212) target = $region24
      $region23: #{bottleneck_pallas.1} parent=11 // pred_region
        _
      $region24: #{bottleneck_pallas.1} parent=11 // pred_fallthru
        _
      // Predicated region
      $region25: #{bottleneck_pallas.1} parent=11 // pred_check
        %p215 = pneg %p123
      $region26: #{bottleneck_pallas.1} parent=11 // pred_check_branch
        %217 = sbr.rel (%p215) target = $region28
      $region27: #{bottleneck_pallas.1} parent=11 // pred_region
        _
      $region28: #{bottleneck_pallas.1} parent=11 // pred_fallthru
        _
      // Predicated region
      $region29: #{bottleneck_pallas.1} parent=11 // pred_check
        %p218 = pneg %p144
      $region30: #{bottleneck_pallas.1} parent=11 // pred_check_branch
        %220 = sbr.rel (%p218) target = $region32
      $region31: #{bottleneck_pallas.1} parent=11 // pred_region
        _
      $region32: #{bottleneck_pallas.1} parent=11 // pred_fallthru
        _
      // Predicated region
      $region33: #{bottleneck_pallas.1} parent=11 // pred_check
        %p221 = pneg %p165
      $region34: #{bottleneck_pallas.1} parent=11 // pred_check_branch
        %223 = sbr.rel (%p221) target = $region36
      $region35: #{bottleneck_pallas.1} parent=11 // pred_region
        _
      $region36: #{bottleneck_pallas.1} parent=11 // pred_fallthru
        _
    $region12: #{bottleneck_pallas.1} parent=5 // pred_fallthru
      _
    %p224 = scmp.lt.s32.totalorder %s13, 2
    // Predicated region
    $region37: #{bottleneck_pallas.1} parent=5 // pred_check
      %p225 = pneg %p224
    $region38: #{bottleneck_pallas.1} parent=5 // pred_check_branch
      %227 = sbr.rel (%p225) target = $region40
    $region39: #{bottleneck_pallas.1} parent=5 // pred_region
      // Predicated region
      $region41: #{bottleneck_pallas.1} parent=39 // pred_check
        %p228 = pneg %p33
      $region42: #{bottleneck_pallas.1} parent=39 // pred_check_branch
        %230 = sbr.rel (%p228) target = $region44
      $region43: #{bottleneck_pallas.1} parent=39 // pred_region
        %s231 = smul.u32 2, %s13
        %p232 = scmp.lt.s32.totalorder %s231, 3
        %s233 = scalar_select %p232, %s231, 3
        %s234 = smul.addr %s233, 8
        %s235 = smul.addr %s234, 8
        %s236 = scalar_lea.vmem %s0, %s235
        %s237 = smul.u32 2, %s13
      $region44: #{bottleneck_pallas.1} parent=39 // pred_fallthru
        _
    $region40: #{bottleneck_pallas.1} parent=5 // pred_fallthru
      _
    %p238 = scmp.le.s32.totalorder 1, %s13
    %p239 = scmp.lt.s32.totalorder %s13, 3
    %p240 = pnand %p238, %p239
    %p241 = pneg %p240
    // Predicated region
    $region45: #{bottleneck_pallas.1} parent=5 // pred_check
      _
    $region46: #{bottleneck_pallas.1} parent=5 // pred_check_branch
      %243 = sbr.rel (%p240) target = $region48
    $region47: #{bottleneck_pallas.1} parent=5 // pred_region
      %s244 = ssub.s32 %s13, 1
      %s245 = smul.u32 2, %s18
      %p246 = scmp.lt.s32.totalorder %s245, 3
      %s247 = scalar_select %p246, %s245, 3
      %s248 = smul.addr %s247, 8
      %s249 = smul.addr %s248, 8
      %s250 = scalar_lea.vmem %s0, %s249
      %p251 = pneg %p39
      %p252 = pneg %p36
      %p253 = pneg %p60
      %p254 = pneg %p57
      %p255 = pneg %p81
      %p256 = pneg %p78
      %p257 = pneg %p102
      %p258 = pneg %p99
      %p259 = pneg %p123
      %p260 = pneg %p120
      %p261 = pneg %p144
      %p262 = pneg %p141
      %p263 = pneg %p165
      %p264 = pneg %p162
      %p265 = pneg %p191
      %p266 = pneg %p188
      %s267 = smul.u32 2, %s18
      %p268 = scmp.lt.s32.totalorder %s267, 3
      %s269 = scalar_select %p268, %s267, 3
      %s270 = smul.addr %s269, 8
      %s271 = smul.addr %s270, 8
      %s272 = scalar_lea.vmem %s7, %s271
      %s273 = smul.u32 2, %s18
      %p274 = scmp.lt.s32.totalorder %s273, 3
      %s275 = scalar_select %p274, %s273, 3
      %s276 = smul.addr %s275, 8
      %s277 = smul.addr %s276, 8
      %s278 = scalar_lea.vmem %s0, %s277
      %s279 = smul.u32 2, %s18
      %s280 = smul.u32 2, %s18
      %p281 = scmp.lt.s32.totalorder %s280, 3
      %s282 = scalar_select %p281, %s280, 3
      %s283 = smul.addr %s282, 8
      %s284 = smul.addr %s283, 8
      %s285 = scalar_lea.vmem %s7, %s284
      %s286 = smul.u32 2, %s18
      %v287 = vlaneseq
      %v288 = vand.u32 %v287, 127
      %v289 = vadd.s32 %v288, 128
      %v290 = vand.u32 %v288, 15
      %v291 = vand.u32 %v289, 15
      %vm292 = vcmp.ge.s32.totalorder %v288, 16
      %vm293 = vcmp.ge.s32.totalorder %v289, 16
      %vm294 = vcmp.ge.s32.totalorder %v290, 1
      %vm295 = vcmp.ge.s32.totalorder %v291, 1
      %vm296 = vmand %vm292, %vm294
      %vm297 = vmand %vm293, %vm295
      %vm298 = vcmp.lt.s32.totalorder %v290, 15
      %vm299 = vcmp.lt.s32.totalorder %v291, 15
      %vm300 = vmand %vm292, %vm298
      %vm301 = vmand %vm293, %vm299
      %vm302 = vcmp.lt.s32.totalorder %v288, 240
      %vm303 = vcmp.lt.s32.totalorder %v289, 240
      %vm304 = vmand %vm302, %vm294
      %vm305 = vmand %vm303, %vm295
      %vm306 = vmand %vm302, %vm298
      %vm307 = vmand %vm303, %vm299
      %v308 = vld [vmem:[%s278] sm:$0xff]
      %v309 = vld [vmem:[%s278 + $0x8] sm:$0xff]
      %v310 = vld [vmem:[%s278 + $0x10] sm:$0xff]
      %v311 = vld [vmem:[%s278 + $0x18] sm:$0xff]
      %v312 = vld [vmem:[%s278 + $0x20] sm:$0xff]
      %v313 = vld [vmem:[%s278 + $0x28] sm:$0xff]
      %v314 = vld [vmem:[%s278 + $0x30] sm:$0xff]
      %v315 = vld [vmem:[%s278 + $0x38] sm:$0xff]
      %v316 = vld [vmem:[%s1] sm:$0xff]
      %v317 = vld [vmem:[%s2] sm:$0xff]
      %319 = vset.pattern.permute.xlu0 0
      %320 = vperm.xlu0 %319, %v317
      %v321 = vpop.permute.xlu0 %320
      %vm323 = vcmask 261120
      %v325 = vsel %vm323, %v316, 0
      %327 = vmatprep.subr.mxu0 %v309
      %328 = vmatpush1.msra.mxu0 %v308
      %329 = vmatprep.subr.mxu0 %v311
      %330 = vmatpush1.msra.mxu0 %v310
      %331 = vmatprep.subr.mxu0 %v313
      %332 = vmatpush1.msra.mxu0 %v312
      %333 = vmatprep.subr.mxu0 %v315
      %334 = vmatpush1.msra.mxu0 %v314
      %335 = vmatprep.subr.mxu0 0.0
      %336 = vmatpush1.msra.mxu0 0.0
      %337 = vmatprep.subr.mxu0 0.0
      %338 = vmatpush1.msra.mxu0 0.0
      %339 = vmatprep.subr.mxu0 0.0
      %340 = vmatpush1.msra.mxu0 0.0
      %341 = vmatprep.subr.mxu0 0.0
      %342 = vmatpush1.msra.mxu0 0.0
      %343 = vmatprep.subr.mxu0 0.0
      %344 = vmatpush1.msra.mxu0 0.0
      %345 = vmatprep.subr.mxu0 0.0
      %346 = vmatpush1.msra.mxu0 0.0
      %347 = vmatprep.subr.mxu0 0.0
      %348 = vmatpush1.msra.mxu0 0.0
      %349 = vmatprep.subr.mxu0 0.0
      %350 = vmatpush1.msra.mxu0 0.0
      %351 = vmatprep.subr.mxu0 0.0
      %352 = vmatpush1.msra.mxu0 0.0
      %353 = vmatprep.subr.mxu0 0.0
      %354 = vmatpush1.msra.mxu0 0.0
      %355 = vmatprep.subr.mxu0 0.0
      %356 = vmatpush1.msra.mxu0 0.0
      %357 = vmatprep.subr.mxu0 0.0
      %358 = vmatpush1.msra.mxu0 0.0
      %359 = vmatprep.subr.mxu0 0.0
      %360 = vmatpush1.msra.mxu0 0.0
      %361 = vmatprep.subr.mxu0 0.0
      %362 = vmatpush1.msra.mxu0 0.0
      %363 = vmatprep.subr.mxu0 0.0
      %364 = vmatpush1.msra.mxu0 0.0
      %365 = vmatprep.subr.mxu0 0.0
      %366 = vmatpush1.msra.mxu0 0.0
      %367 = vmatprep.subr.mxu0 0.0
      %368 = vmatpush1.msra.mxu0 0.0
      %369 = vmatprep.subr.mxu0 0.0
      %370 = vmatpush1.msra.mxu0 0.0
      %371 = vmatprep.subr.mxu0 0.0
      %372 = vmatpush1.msra.mxu0 0.0
      %373 = vmatprep.subr.mxu0 0.0
      %374 = vmatpush1.msra.mxu0 0.0
      %375 = vmatprep.subr.mxu0 0.0
      %376 = vmatpush1.msra.mxu0 0.0
      %377 = vmatprep.subr.mxu0 0.0
      %378 = vmatpush1.msra.mxu0 0.0
      %379 = vmatprep.subr.mxu0 0.0
      %380 = vmatpush1.msra.mxu0 0.0
      %381 = vmatprep.subr.mxu0 0.0
      %382 = vmatpush1.msra.mxu0 0.0
      %383 = vmatprep.subr.mxu0 0.0
      %384 = vmatpush1.msra.mxu0 0.0
      %385 = vmatprep.subr.mxu0 0.0
      %386 = vmatpush1.msra.mxu0 0.0
      %387 = vmatprep.subr.mxu0 0.0
      %388 = vmatpush1.msra.mxu0 0.0
      %389 = vmatprep.subr.mxu0 0.0
      %390 = vmatpush1.msra.mxu0 0.0
      %391 = vmatprep.mubr.f32.mxu0 0.0
      %392 = vmatmul.mubr.f32.gmra.mrb[0].mxu0 %v325
      %v393 = vpop.f32.mrb[0].mxu0
      %v394 = vadd.f32 %v321, %v393
      %v395 = vpop.f32.mrb[0].mxu0
      %v396 = vadd.f32 %v321, %v395
      %397 = vdwg.mxu0
      %v398 = vmax.f32 %v394, 0.0
      %v399 = vmax.f32 %v396, 0.0
      %400 = vrot.lane.b32.xlu0 %v398, 17
      %v401 = vpop.permute.xlu0 %400
      %402 = vrot.lane.b32.xlu0 %v399, 17
      %v403 = vpop.permute.xlu0 %402
      %vm404 = vcmp.lt.s32.totalorder %v288, 17
      %v405 = vsel %vm404, %v401, %v403
      %v406 = vsel %vm404, %v403, %v401
      %v407 = vsel %vm296, 1, 0
      %v408 = vsel %vm297, 1, 0
      %vm409 = vcmp.eq.s32.totalorder %v407, 1
      %vm410 = vcmp.eq.s32.totalorder %v408, 1
      %v411 = vsel %vm409, %v406, 0.0
      %v412 = vsel %vm410, %v405, 0.0
      %413 = vrot.lane.b32.xlu0 %v398, 16
      %v414 = vpop.permute.xlu0 %413
      %415 = vrot.lane.b32.xlu0 %v399, 16
      %v416 = vpop.permute.xlu0 %415
      %vm417 = vcmp.lt.s32.totalorder %v288, 16
      %v418 = vsel %vm417, %v414, %v416
      %v419 = vsel %vm417, %v416, %v414
      %v420 = vsel %vm292, 1, 0
      %v421 = vsel %vm293, 1, 0
      %vm422 = vcmp.eq.s32.totalorder %v420, 1
      %vm423 = vcmp.eq.s32.totalorder %v421, 1
      %v424 = vsel %vm422, %v419, 0.0
      %v425 = vsel %vm423, %v418, 0.0
      %426 = vrot.lane.b32.xlu0 %v398, 15
      %v427 = vpop.permute.xlu0 %426
      %428 = vrot.lane.b32.xlu0 %v399, 15
      %v429 = vpop.permute.xlu0 %428
      %vm430 = vcmp.lt.s32.totalorder %v288, 15
      %v431 = vsel %vm430, %v427, %v429
      %v432 = vsel %vm430, %v429, %v427
      %v433 = vsel %vm300, 1, 0
      %v434 = vsel %vm301, 1, 0
      %vm435 = vcmp.eq.s32.totalorder %v433, 1
      %vm436 = vcmp.eq.s32.totalorder %v434, 1
      %v437 = vsel %vm435, %v432, 0.0
      %v438 = vsel %vm436, %v431, 0.0
      %439 = vrot.lane.b32.xlu0 %v398, 1
      %v440 = vpop.permute.xlu0 %439
      %441 = vrot.lane.b32.xlu0 %v399, 1
      %v442 = vpop.permute.xlu0 %441
      %vm443 = vcmp.lt.s32.totalorder %v288, 1
      %v444 = vsel %vm443, %v440, %v442
      %v445 = vsel %vm443, %v442, %v440
      %v446 = vsel %vm294, 1, 0
      %v447 = vsel %vm295, 1, 0
      %vm448 = vcmp.eq.s32.totalorder %v446, 1
      %vm449 = vcmp.eq.s32.totalorder %v447, 1
      %v450 = vsel %vm448, %v445, 0.0
      %v451 = vsel %vm449, %v444, 0.0
      %452 = vrot.lane.b32.xlu0 %v398, 127
      %v453 = vpop.permute.xlu0 %452
      %454 = vrot.lane.b32.xlu0 %v399, 127
      %v455 = vpop.permute.xlu0 %454
      %vm456 = vcmp.lt.s32.totalorder %v288, 127
      %v457 = vsel %vm456, %v453, %v455
      %v458 = vsel %vm456, %v455, %v453
      %v459 = vsel %vm298, 1, 0
      %v460 = vsel %vm299, 1, 0
      %vm461 = vcmp.eq.s32.totalorder %v459, 1
      %vm462 = vcmp.eq.s32.totalorder %v460, 1
      %v463 = vsel %vm461, %v457, 0.0
      %v464 = vsel %vm462, %v458, 0.0
      %465 = vrot.lane.b32.xlu0 %v398, 113
      %v466 = vpop.permute.xlu0 %465
      %467 = vrot.lane.b32.xlu0 %v399, 113
      %v468 = vpop.permute.xlu0 %467
      %vm469 = vcmp.lt.s32.totalorder %v288, 113
      %v470 = vsel %vm469, %v466, %v468
      %v471 = vsel %vm469, %v468, %v466
      %v472 = vsel %vm304, 1, 0
      %v473 = vsel %vm305, 1, 0
      %vm474 = vcmp.eq.s32.totalorder %v472, 1
      %vm475 = vcmp.eq.s32.totalorder %v473, 1
      %v476 = vsel %vm474, %v470, 0.0
      %v477 = vsel %vm475, %v471, 0.0
      %478 = vrot.lane.b32.xlu0 %v398, 112
      %v479 = vpop.permute.xlu0 %478
      %480 = vrot.lane.b32.xlu0 %v399, 112
      %v481 = vpop.permute.xlu0 %480
      %vm482 = vcmp.lt.s32.totalorder %v288, 112
      %v483 = vsel %vm482, %v479, %v481
      %v484 = vsel %vm482, %v481, %v479
      %v485 = vsel %vm302, 1, 0
      %v486 = vsel %vm303, 1, 0
      %vm487 = vcmp.eq.s32.totalorder %v485, 1
      %vm488 = vcmp.eq.s32.totalorder %v486, 1
      %v489 = vsel %vm487, %v483, 0.0
      %v490 = vsel %vm488, %v484, 0.0
      %491 = vrot.lane.b32.xlu0 %v398, 111
      %v492 = vpop.permute.xlu0 %491
      %493 = vrot.lane.b32.xlu0 %v399, 111
      %v494 = vpop.permute.xlu0 %493
      %vm495 = vcmp.lt.s32.totalorder %v288, 111
      %v496 = vsel %vm495, %v492, %v494
      %v497 = vsel %vm495, %v494, %v492
      %v498 = vsel %vm306, 1, 0
      %v499 = vsel %vm307, 1, 0
      %vm500 = vcmp.eq.s32.totalorder %v498, 1
      %vm501 = vcmp.eq.s32.totalorder %v499, 1
      %v502 = vsel %vm500, %v496, 0.0
      %v503 = vsel %vm501, %v497, 0.0
      %v504 = vld [vmem:[%s3] sm:$0xff]
      %v505 = vld [vmem:[%s4] sm:$0xff]
      %507 = vset.pattern.permute.xlu0 0
      %508 = vperm.xlu0 %507, %v505
      %v509 = vpop.permute.xlu0 %508
      %vm511 = vcmask 588800
      %v513 = vsel %vm511, %v504, 0
      %515 = vmatprep.subr.mxu0 %v412
      %516 = vmatpush1.msra.mxu0 %v411
      %517 = vmatprep.subr.mxu0 %v425
      %518 = vmatpush1.msra.mxu0 %v424
      %519 = vmatprep.subr.mxu0 %v438
      %520 = vmatpush1.msra.mxu0 %v437
      %521 = vmatprep.subr.mxu0 %v451
      %522 = vmatpush1.msra.mxu0 %v450
      %523 = vmatprep.subr.mxu0 %v399
      %524 = vmatpush1.msra.mxu0 %v398
      %525 = vmatprep.subr.mxu0 %v464
      %526 = vmatpush1.msra.mxu0 %v463
      %527 = vmatprep.subr.mxu0 %v477
      %528 = vmatpush1.msra.mxu0 %v476
      %529 = vmatprep.subr.mxu0 %v490
      %530 = vmatpush1.msra.mxu0 %v489
      %531 = vmatprep.subr.mxu0 %v503
      %532 = vmatpush1.msra.mxu0 %v502
      %533 = vmatprep.subr.mxu0 0.0
      %534 = vmatpush1.msra.mxu0 0.0
      %535 = vmatprep.subr.mxu0 0.0
      %536 = vmatpush1.msra.mxu0 0.0
      %537 = vmatprep.subr.mxu0 0.0
      %538 = vmatpush1.msra.mxu0 0.0
      %539 = vmatprep.subr.mxu0 0.0
      %540 = vmatpush1.msra.mxu0 0.0
      %541 = vmatprep.subr.mxu0 0.0
      %542 = vmatpush1.msra.mxu0 0.0
      %543 = vmatprep.subr.mxu0 0.0
      %544 = vmatpush1.msra.mxu0 0.0
      %545 = vmatprep.subr.mxu0 0.0
      %546 = vmatpush1.msra.mxu0 0.0
      %547 = vmatprep.subr.mxu0 0.0
      %548 = vmatpush1.msra.mxu0 0.0
      %549 = vmatprep.subr.mxu0 0.0
      %550 = vmatpush1.msra.mxu0 0.0
      %551 = vmatprep.subr.mxu0 0.0
      %552 = vmatpush1.msra.mxu0 0.0
      %553 = vmatprep.subr.mxu0 0.0
      %554 = vmatpush1.msra.mxu0 0.0
      %555 = vmatprep.subr.mxu0 0.0
      %556 = vmatpush1.msra.mxu0 0.0
      %557 = vmatprep.subr.mxu0 0.0
      %558 = vmatpush1.msra.mxu0 0.0
      %559 = vmatprep.subr.mxu0 0.0
      %560 = vmatpush1.msra.mxu0 0.0
      %561 = vmatprep.subr.mxu0 0.0
      %562 = vmatpush1.msra.mxu0 0.0
      %563 = vmatprep.subr.mxu0 0.0
      %564 = vmatpush1.msra.mxu0 0.0
      %565 = vmatprep.subr.mxu0 0.0
      %566 = vmatpush1.msra.mxu0 0.0
      %567 = vmatprep.subr.mxu0 0.0
      %568 = vmatpush1.msra.mxu0 0.0
      %569 = vmatprep.subr.mxu0 0.0
      %570 = vmatpush1.msra.mxu0 0.0
      %571 = vmatprep.subr.mxu0 0.0
      %572 = vmatpush1.msra.mxu0 0.0
      %573 = vmatprep.subr.mxu0 0.0
      %574 = vmatpush1.msra.mxu0 0.0
      %575 = vmatprep.subr.mxu0 0.0
      %576 = vmatpush1.msra.mxu0 0.0
      %577 = vmatprep.subr.mxu0 0.0
      %578 = vmatpush1.msra.mxu0 0.0
      %579 = vmatprep.mubr.f32.mxu0 0.0
      %580 = vmatmul.mubr.f32.gmra.mrb[0].mxu0 %v513
      %v581 = vpop.f32.mrb[0].mxu0
      %v582 = vadd.f32 %v509, %v581
      %v583 = vpop.f32.mrb[0].mxu0
      %v584 = vadd.f32 %v509, %v583
      %585 = vdwg.mxu0
      %v586 = vmax.f32 %v582, 0.0
      %v587 = vmax.f32 %v584, 0.0
      %v588 = vld [vmem:[%s5] sm:$0xff]
      %v589 = vld [vmem:[%s5 + $0x8] sm:$0xff]
      %v590 = vld [vmem:[%s5 + $0x10] sm:$0xff]
      %v591 = vld [vmem:[%s5 + $0x18] sm:$0xff]
      %v592 = vld [vmem:[%s6] sm:$0xff]
      %v593 = vld [vmem:[%s6 + $0x8] sm:$0xff]
      %v594 = vld [vmem:[%s6 + $0x10] sm:$0xff]
      %v595 = vld [vmem:[%s6 + $0x18] sm:$0xff]
      %597 = vset.pattern.permute.xlu0 0
      %598 = vperm.xlu0 %597, %v592
      %v599 = vpop.permute.xlu0 %598
      %602 = vset.pattern.permute.xlu0 0
      %603 = vperm.xlu0 %602, %v593
      %v604 = vpop.permute.xlu0 %603
      %607 = vset.pattern.permute.xlu0 0
      %608 = vperm.xlu0 %607, %v594
      %v609 = vpop.permute.xlu0 %608
      %612 = vset.pattern.permute.xlu0 0
      %613 = vperm.xlu0 %612, %v595
      %v614 = vpop.permute.xlu0 %613
      %vm616 = vcmask 64512
      %v618 = vsel %vm616, %v588, 0
      %v621 = vsel %vm616, %v589, 0
      %v624 = vsel %vm616, %v590, 0
      %v627 = vsel %vm616, %v591, 0
      %629 = vmatprep.subr.mxu0 %v587
      %630 = vmatpush1.msra.mxu0 %v586
      %631 = vmatprep.subr.mxu0 0.0
      %632 = vmatpush1.msra.mxu0 0.0
      %633 = vmatprep.subr.mxu0 0.0
      %634 = vmatpush1.msra.mxu0 0.0
      %635 = vmatprep.subr.mxu0 0.0
      %636 = vmatpush1.msra.mxu0 0.0
      %637 = vmatprep.subr.mxu0 0.0
      %638 = vmatpush1.msra.mxu0 0.0
      %639 = vmatprep.subr.mxu0 0.0
      %640 = vmatpush1.msra.mxu0 0.0
      %641 = vmatprep.subr.mxu0 0.0
      %642 = vmatpush1.msra.mxu0 0.0
      %643 = vmatprep.subr.mxu0 0.0
      %644 = vmatpush1.msra.mxu0 0.0
      %645 = vmatprep.subr.mxu0 0.0
      %646 = vmatpush1.msra.mxu0 0.0
      %647 = vmatprep.subr.mxu0 0.0
      %648 = vmatpush1.msra.mxu0 0.0
      %649 = vmatprep.subr.mxu0 0.0
      %650 = vmatpush1.msra.mxu0 0.0
      %651 = vmatprep.subr.mxu0 0.0
      %652 = vmatpush1.msra.mxu0 0.0
      %653 = vmatprep.subr.mxu0 0.0
      %654 = vmatpush1.msra.mxu0 0.0
      %655 = vmatprep.subr.mxu0 0.0
      %656 = vmatpush1.msra.mxu0 0.0
      %657 = vmatprep.subr.mxu0 0.0
      %658 = vmatpush1.msra.mxu0 0.0
      %659 = vmatprep.subr.mxu0 0.0
      %660 = vmatpush1.msra.mxu0 0.0
      %661 = vmatprep.subr.mxu0 0.0
      %662 = vmatpush1.msra.mxu0 0.0
      %663 = vmatprep.subr.mxu0 0.0
      %664 = vmatpush1.msra.mxu0 0.0
      %665 = vmatprep.subr.mxu0 0.0
      %666 = vmatpush1.msra.mxu0 0.0
      %667 = vmatprep.subr.mxu0 0.0
      %668 = vmatpush1.msra.mxu0 0.0
      %669 = vmatprep.subr.mxu0 0.0
      %670 = vmatpush1.msra.mxu0 0.0
      %671 = vmatprep.subr.mxu0 0.0
      %672 = vmatpush1.msra.mxu0 0.0
      %673 = vmatprep.subr.mxu0 0.0
      %674 = vmatpush1.msra.mxu0 0.0
      %675 = vmatprep.subr.mxu0 0.0
      %676 = vmatpush1.msra.mxu0 0.0
      %677 = vmatprep.subr.mxu0 0.0
      %678 = vmatpush1.msra.mxu0 0.0
      %679 = vmatprep.subr.mxu0 0.0
      %680 = vmatpush1.msra.mxu0 0.0
      %681 = vmatprep.subr.mxu0 0.0
      %682 = vmatpush1.msra.mxu0 0.0
      %683 = vmatprep.subr.mxu0 0.0
      %684 = vmatpush1.msra.mxu0 0.0
      %685 = vmatprep.subr.mxu0 0.0
      %686 = vmatpush1.msra.mxu0 0.0
      %687 = vmatprep.subr.mxu0 0.0
      %688 = vmatpush1.msra.mxu0 0.0
      %689 = vmatprep.subr.mxu0 0.0
      %690 = vmatpush1.msra.mxu0 0.0
      %691 = vmatprep.subr.mxu0 0.0
      %692 = vmatpush1.msra.mxu0 0.0
      %693 = vmatprep.mubr.f32.mxu0 0.0
      %694 = vmatmul.mubr.f32.gmra.mrb[0].mxu0 %v618
      %v695 = vpop.f32.mrb[0].mxu0
      %v696 = vadd.f32 %v599, %v695
      %v697 = vpop.f32.mrb[0].mxu0
      %v698 = vadd.f32 %v599, %v697
      %699 = vmatprep.mubr.f32.mxu0 0.0
      %700 = vmatmul.mubr.f32.gmra.mrb[0].mxu0 %v621
      %v701 = vpop.f32.mrb[0].mxu0
      %v702 = vadd.f32 %v604, %v701
      %v703 = vpop.f32.mrb[0].mxu0
      %v704 = vadd.f32 %v604, %v703
      %705 = vmatprep.mubr.f32.mxu0 0.0
      %706 = vmatmul.mubr.f32.gmra.mrb[0].mxu0 %v624
      %v707 = vpop.f32.mrb[0].mxu0
      %v708 = vadd.f32 %v609, %v707
      %v709 = vpop.f32.mrb[0].mxu0
      %v710 = vadd.f32 %v609, %v709
      %711 = vmatprep.mubr.f32.mxu0 0.0
      %712 = vmatmul.mubr.f32.gmra.mrb[0].mxu0 %v627
      %v713 = vpop.f32.mrb[0].mxu0
      %v714 = vadd.f32 %v614, %v713
      %v715 = vpop.f32.mrb[0].mxu0
      %v716 = vadd.f32 %v614, %v715
      %717 = vdwg.mxu0
      %v718 = vadd.f32 %v696, %v308
      %v719 = vadd.f32 %v698, %v309
      %v720 = vadd.f32 %v702, %v310
      %v721 = vadd.f32 %v704, %v311
      %v722 = vadd.f32 %v708, %v312
      %v723 = vadd.f32 %v710, %v313
      %v724 = vadd.f32 %v714, %v314
      %v725 = vadd.f32 %v716, %v315
      %v726 = vmax.f32 %v718, 0.0
      %v727 = vmax.f32 %v719, 0.0
      %v728 = vmax.f32 %v720, 0.0
      %v729 = vmax.f32 %v721, 0.0
      %v730 = vmax.f32 %v722, 0.0
      %v731 = vmax.f32 %v723, 0.0
      %v732 = vmax.f32 %v724, 0.0
      %v733 = vmax.f32 %v725, 0.0
      %734 = vst [vmem:[%s285] sm:$0xff] %v726
      %735 = vst [vmem:[%s285 + $0x8] sm:$0xff] %v727
      %736 = vst [vmem:[%s285 + $0x10] sm:$0xff] %v728
      %737 = vst [vmem:[%s285 + $0x18] sm:$0xff] %v729
      %738 = vst [vmem:[%s285 + $0x20] sm:$0xff] %v730
      %739 = vst [vmem:[%s285 + $0x28] sm:$0xff] %v731
      %740 = vst [vmem:[%s285 + $0x30] sm:$0xff] %v732
      %741 = vst [vmem:[%s285 + $0x38] sm:$0xff] %v733
      %s742 = scalar_lea.vmem %s278, 64
      %v743 = vld [vmem:[%s742] sm:$0xff]
      %v744 = vld [vmem:[%s742 + $0x8] sm:$0xff]
      %v745 = vld [vmem:[%s742 + $0x10] sm:$0xff]
      %v746 = vld [vmem:[%s742 + $0x18] sm:$0xff]
      %v747 = vld [vmem:[%s742 + $0x20] sm:$0xff]
      %v748 = vld [vmem:[%s742 + $0x28] sm:$0xff]
      %v749 = vld [vmem:[%s742 + $0x30] sm:$0xff]
      %v750 = vld [vmem:[%s742 + $0x38] sm:$0xff]
      %v751 = vld [vmem:[%s1] sm:$0xff]
      %v752 = vld [vmem:[%s2] sm:$0xff]
      %754 = vset.pattern.permute.xlu0 0
      %755 = vperm.xlu0 %754, %v752
      %v756 = vpop.permute.xlu0 %755
      %v759 = vsel %vm323, %v751, 0
      %761 = vmatprep.subr.mxu0 %v744
      %762 = vmatpush1.msra.mxu0 %v743
      %763 = vmatprep.subr.mxu0 %v746
      %764 = vmatpush1.msra.mxu0 %v745
      %765 = vmatprep.subr.mxu0 %v748
      %766 = vmatpush1.msra.mxu0 %v747
      %767 = vmatprep.subr.mxu0 %v750
      %768 = vmatpush1.msra.mxu0 %v749
      %769 = vmatprep.subr.mxu0 0.0
      %770 = vmatpush1.msra.mxu0 0.0
      %771 = vmatprep.subr.mxu0 0.0
      %772 = vmatpush1.msra.mxu0 0.0
      %773 = vmatprep.subr.mxu0 0.0
      %774 = vmatpush1.msra.mxu0 0.0
      %775 = vmatprep.subr.mxu0 0.0
      %776 = vmatpush1.msra.mxu0 0.0
      %777 = vmatprep.subr.mxu0 0.0
      %778 = vmatpush1.msra.mxu0 0.0
      %779 = vmatprep.subr.mxu0 0.0
      %780 = vmatpush1.msra.mxu0 0.0
      %781 = vmatprep.subr.mxu0 0.0
      %782 = vmatpush1.msra.mxu0 0.0
      %783 = vmatprep.subr.mxu0 0.0
      %784 = vmatpush1.msra.mxu0 0.0
      %785 = vmatprep.subr.mxu0 0.0
      %786 = vmatpush1.msra.mxu0 0.0
      %787 = vmatprep.subr.mxu0 0.0
      %788 = vmatpush1.msra.mxu0 0.0
      %789 = vmatprep.subr.mxu0 0.0
      %790 = vmatpush1.msra.mxu0 0.0
      %791 = vmatprep.subr.mxu0 0.0
      %792 = vmatpush1.msra.mxu0 0.0
      %793 = vmatprep.subr.mxu0 0.0
      %794 = vmatpush1.msra.mxu0 0.0
      %795 = vmatprep.subr.mxu0 0.0
      %796 = vmatpush1.msra.mxu0 0.0
      %797 = vmatprep.subr.mxu0 0.0
      %798 = vmatpush1.msra.mxu0 0.0
      %799 = vmatprep.subr.mxu0 0.0
      %800 = vmatpush1.msra.mxu0 0.0
      %801 = vmatprep.subr.mxu0 0.0
      %802 = vmatpush1.msra.mxu0 0.0
      %803 = vmatprep.subr.mxu0 0.0
      %804 = vmatpush1.msra.mxu0 0.0
      %805 = vmatprep.subr.mxu0 0.0
      %806 = vmatpush1.msra.mxu0 0.0
      %807 = vmatprep.subr.mxu0 0.0
      %808 = vmatpush1.msra.mxu0 0.0
      %809 = vmatprep.subr.mxu0 0.0
      %810 = vmatpush1.msra.mxu0 0.0
      %811 = vmatprep.subr.mxu0 0.0
      %812 = vmatpush1.msra.mxu0 0.0
      %813 = vmatprep.subr.mxu0 0.0
      %814 = vmatpush1.msra.mxu0 0.0
      %815 = vmatprep.subr.mxu0 0.0
      %816 = vmatpush1.msra.mxu0 0.0
      %817 = vmatprep.subr.mxu0 0.0
      %818 = vmatpush1.msra.mxu0 0.0
      %819 = vmatprep.subr.mxu0 0.0
      %820 = vmatpush1.msra.mxu0 0.0
      %821 = vmatprep.subr.mxu0 0.0
      %822 = vmatpush1.msra.mxu0 0.0
      %823 = vmatprep.subr.mxu0 0.0
      %824 = vmatpush1.msra.mxu0 0.0
      %825 = vmatprep.mubr.f32.mxu0 0.0
      %826 = vmatmul.mubr.f32.gmra.mrb[0].mxu0 %v759
      %v827 = vpop.f32.mrb[0].mxu0
      %v828 = vadd.f32 %v756, %v827
      %v829 = vpop.f32.mrb[0].mxu0
      %v830 = vadd.f32 %v756, %v829
      %831 = vdwg.mxu0
      %v832 = vmax.f32 %v828, 0.0
      %v833 = vmax.f32 %v830, 0.0
      %834 = vrot.lane.b32.xlu0 %v832, 17
      %v835 = vpop.permute.xlu0 %834
      %836 = vrot.lane.b32.xlu0 %v833, 17
      %v837 = vpop.permute.xlu0 %836
      %v838 = vsel %vm404, %v835, %v837
      %v839 = vsel %vm404, %v837, %v835
      %v840 = vsel %vm409, %v839, 0.0
      %v841 = vsel %vm410, %v838, 0.0
      %842 = vrot.lane.b32.xlu0 %v832, 16
      %v843 = vpop.permute.xlu0 %842
      %844 = vrot.lane.b32.xlu0 %v833, 16
      %v845 = vpop.permute.xlu0 %844
      %v846 = vsel %vm417, %v843, %v845
      %v847 = vsel %vm417, %v845, %v843
      %v848 = vsel %vm422, %v847, 0.0
      %v849 = vsel %vm423, %v846, 0.0
      %850 = vrot.lane.b32.xlu0 %v832, 15
      %v851 = vpop.permute.xlu0 %850
      %852 = vrot.lane.b32.xlu0 %v833, 15
      %v853 = vpop.permute.xlu0 %852
      %v854 = vsel %vm430, %v851, %v853
      %v855 = vsel %vm430, %v853, %v851
      %v856 = vsel %vm435, %v855, 0.0
      %v857 = vsel %vm436, %v854, 0.0
      %858 = vrot.lane.b32.xlu0 %v832, 1
      %v859 = vpop.permute.xlu0 %858
      %860 = vrot.lane.b32.xlu0 %v833, 1
      %v861 = vpop.permute.xlu0 %860
      %v862 = vsel %vm443, %v859, %v861
      %v863 = vsel %vm443, %v861, %v859
      %v864 = vsel %vm448, %v863, 0.0
      %v865 = vsel %vm449, %v862, 0.0
      %866 = vrot.lane.b32.xlu0 %v832, 127
      %v867 = vpop.permute.xlu0 %866
      %868 = vrot.lane.b32.xlu0 %v833, 127
      %v869 = vpop.permute.xlu0 %868
      %v870 = vsel %vm456, %v867, %v869
      %v871 = vsel %vm456, %v869, %v867
      %v872 = vsel %vm461, %v870, 0.0
      %v873 = vsel %vm462, %v871, 0.0
      %874 = vrot.lane.b32.xlu0 %v832, 113
      %v875 = vpop.permute.xlu0 %874
      %876 = vrot.lane.b32.xlu0 %v833, 113
      %v877 = vpop.permute.xlu0 %876
      %v878 = vsel %vm469, %v875, %v877
      %v879 = vsel %vm469, %v877, %v875
      %v880 = vsel %vm474, %v878, 0.0
      %v881 = vsel %vm475, %v879, 0.0
      %882 = vrot.lane.b32.xlu0 %v832, 112
      %v883 = vpop.permute.xlu0 %882
      %884 = vrot.lane.b32.xlu0 %v833, 112
      %v885 = vpop.permute.xlu0 %884
      %v886 = vsel %vm482, %v883, %v885
      %v887 = vsel %vm482, %v885, %v883
      %v888 = vsel %vm487, %v886, 0.0
      %v889 = vsel %vm488, %v887, 0.0
      %890 = vrot.lane.b32.xlu0 %v832, 111
      %v891 = vpop.permute.xlu0 %890
      %892 = vrot.lane.b32.xlu0 %v833, 111
      %v893 = vpop.permute.xlu0 %892
      %v894 = vsel %vm495, %v891, %v893
      %v895 = vsel %vm495, %v893, %v891
      %v896 = vsel %vm500, %v894, 0.0
      %v897 = vsel %vm501, %v895, 0.0
      %v898 = vld [vmem:[%s3] sm:$0xff]
      %v899 = vld [vmem:[%s4] sm:$0xff]
      %901 = vset.pattern.permute.xlu0 0
      %902 = vperm.xlu0 %901, %v899
      %v903 = vpop.permute.xlu0 %902
      %v906 = vsel %vm511, %v898, 0
      %908 = vmatprep.subr.mxu0 %v841
      %909 = vmatpush1.msra.mxu0 %v840
      %910 = vmatprep.subr.mxu0 %v849
      %911 = vmatpush1.msra.mxu0 %v848
      %912 = vmatprep.subr.mxu0 %v857
      %913 = vmatpush1.msra.mxu0 %v856
      %914 = vmatprep.subr.mxu0 %v865
      %915 = vmatpush1.msra.mxu0 %v864
      %916 = vmatprep.subr.mxu0 %v833
      %917 = vmatpush1.msra.mxu0 %v832
      %918 = vmatprep.subr.mxu0 %v873
      %919 = vmatpush1.msra.mxu0 %v872
      %920 = vmatprep.subr.mxu0 %v881
      %921 = vmatpush1.msra.mxu0 %v880
      %922 = vmatprep.subr.mxu0 %v889
      %923 = vmatpush1.msra.mxu0 %v888
      %924 = vmatprep.subr.mxu0 %v897
      %925 = vmatpush1.msra.mxu0 %v896
      %926 = vmatprep.subr.mxu0 0.0
      %927 = vmatpush1.msra.mxu0 0.0
      %928 = vmatprep.subr.mxu0 0.0
      %929 = vmatpush1.msra.mxu0 0.0
      %930 = vmatprep.subr.mxu0 0.0
      %931 = vmatpush1.msra.mxu0 0.0
      %932 = vmatprep.subr.mxu0 0.0
      %933 = vmatpush1.msra.mxu0 0.0
      %934 = vmatprep.subr.mxu0 0.0
      %935 = vmatpush1.msra.mxu0 0.0
      %936 = vmatprep.subr.mxu0 0.0
      %937 = vmatpush1.msra.mxu0 0.0
      %938 = vmatprep.subr.mxu0 0.0
      %939 = vmatpush1.msra.mxu0 0.0
      %940 = vmatprep.subr.mxu0 0.0
      %941 = vmatpush1.msra.mxu0 0.0
      %942 = vmatprep.subr.mxu0 0.0
      %943 = vmatpush1.msra.mxu0 0.0
      %944 = vmatprep.subr.mxu0 0.0
      %945 = vmatpush1.msra.mxu0 0.0
      %946 = vmatprep.subr.mxu0 0.0
      %947 = vmatpush1.msra.mxu0 0.0
      %948 = vmatprep.subr.mxu0 0.0
      %949 = vmatpush1.msra.mxu0 0.0
      %950 = vmatprep.subr.mxu0 0.0
      %951 = vmatpush1.msra.mxu0 0.0
      %952 = vmatprep.subr.mxu0 0.0
      %953 = vmatpush1.msra.mxu0 0.0
      %954 = vmatprep.subr.mxu0 0.0
      %955 = vmatpush1.msra.mxu0 0.0
      %956 = vmatprep.subr.mxu0 0.0
      %957 = vmatpush1.msra.mxu0 0.0
      %958 = vmatprep.subr.mxu0 0.0
      %959 = vmatpush1.msra.mxu0 0.0
      %960 = vmatprep.subr.mxu0 0.0
      %961 = vmatpush1.msra.mxu0 0.0
      %962 = vmatprep.subr.mxu0 0.0
      %963 = vmatpush1.msra.mxu0 0.0
      %964 = vmatprep.subr.mxu0 0.0
      %965 = vmatpush1.msra.mxu0 0.0
      %966 = vmatprep.subr.mxu0 0.0
      %967 = vmatpush1.msra.mxu0 0.0
      %968 = vmatprep.subr.mxu0 0.0
      %969 = vmatpush1.msra.mxu0 0.0
      %970 = vmatprep.subr.mxu0 0.0
      %971 = vmatpush1.msra.mxu0 0.0
      %972 = vmatprep.mubr.f32.mxu0 0.0
      %973 = vmatmul.mubr.f32.gmra.mrb[0].mxu0 %v906
      %v974 = vpop.f32.mrb[0].mxu0
      %v975 = vadd.f32 %v903, %v974
      %v976 = vpop.f32.mrb[0].mxu0
      %v977 = vadd.f32 %v903, %v976
      %978 = vdwg.mxu0
      %v979 = vmax.f32 %v975, 0.0
      %v980 = vmax.f32 %v977, 0.0
      %v981 = vld [vmem:[%s5] sm:$0xff]
      %v982 = vld [vmem:[%s5 + $0x8] sm:$0xff]
      %v983 = vld [vmem:[%s5 + $0x10] sm:$0xff]
      %v984 = vld [vmem:[%s5 + $0x18] sm:$0xff]
      %v985 = vld [vmem:[%s6] sm:$0xff]
      %v986 = vld [vmem:[%s6 + $0x8] sm:$0xff]
      %v987 = vld [vmem:[%s6 + $0x10] sm:$0xff]
      %v988 = vld [vmem:[%s6 + $0x18] sm:$0xff]
      %990 = vset.pattern.permute.xlu0 0
      %991 = vperm.xlu0 %990, %v985
      %v992 = vpop.permute.xlu0 %991
      %995 = vset.pattern.permute.xlu0 0
      %996 = vperm.xlu0 %995, %v986
      %v997 = vpop.permute.xlu0 %996
      %1000 = vset.pattern.permute.xlu0 0
      %1001 = vperm.xlu0 %1000, %v987
      %v1002 = vpop.permute.xlu0 %1001
      %1005 = vset.pattern.permute.xlu0 0
      %1006 = vperm.xlu0 %1005, %v988
      %v1007 = vpop.permute.xlu0 %1006
      %v1010 = vsel %vm616, %v981, 0
      %v1013 = vsel %vm616, %v982, 0
      %v1016 = vsel %vm616, %v983, 0
      %v1019 = vsel %vm616, %v984, 0
      %1021 = vmatprep.subr.mxu0 %v980
      %1022 = vmatpush1.msra.mxu0 %v979
      %1023 = vmatprep.subr.mxu0 0.0
      %1024 = vmatpush1.msra.mxu0 0.0
      %1025 = vmatprep.subr.mxu0 0.0
      %1026 = vmatpush1.msra.mxu0 0.0
      %1027 = vmatprep.subr.mxu0 0.0
      %1028 = vmatpush1.msra.mxu0 0.0
      %1029 = vmatprep.subr.mxu0 0.0
      %1030 = vmatpush1.msra.mxu0 0.0
      %1031 = vmatprep.subr.mxu0 0.0
      %1032 = vmatpush1.msra.mxu0 0.0
      %1033 = vmatprep.subr.mxu0 0.0
      %1034 = vmatpush1.msra.mxu0 0.0
      %1035 = vmatprep.subr.mxu0 0.0
      %1036 = vmatpush1.msra.mxu0 0.0
      %1037 = vmatprep.subr.mxu0 0.0
      %1038 = vmatpush1.msra.mxu0 0.0
      %1039 = vmatprep.subr.mxu0 0.0
      %1040 = vmatpush1.msra.mxu0 0.0
      %1041 = vmatprep.subr.mxu0 0.0
      %1042 = vmatpush1.msra.mxu0 0.0
      %1043 = vmatprep.subr.mxu0 0.0
      %1044 = vmatpush1.msra.mxu0 0.0
      %1045 = vmatprep.subr.mxu0 0.0
      %1046 = vmatpush1.msra.mxu0 0.0
      %1047 = vmatprep.subr.mxu0 0.0
      %1048 = vmatpush1.msra.mxu0 0.0
      %1049 = vmatprep.subr.mxu0 0.0
      %1050 = vmatpush1.msra.mxu0 0.0
      %1051 = vmatprep.subr.mxu0 0.0
      %1052 = vmatpush1.msra.mxu0 0.0
      %1053 = vmatprep.subr.mxu0 0.0
      %1054 = vmatpush1.msra.mxu0 0.0
      %1055 = vmatprep.subr.mxu0 0.0
      %1056 = vmatpush1.msra.mxu0 0.0
      %1057 = vmatprep.subr.mxu0 0.0
      %1058 = vmatpush1.msra.mxu0 0.0
      %1059 = vmatprep.subr.mxu0 0.0
      %1060 = vmatpush1.msra.mxu0 0.0
      %1061 = vmatprep.subr.mxu0 0.0
      %1062 = vmatpush1.msra.mxu0 0.0
      %1063 = vmatprep.subr.mxu0 0.0
      %1064 = vmatpush1.msra.mxu0 0.0
      %1065 = vmatprep.subr.mxu0 0.0
      %1066 = vmatpush1.msra.mxu0 0.0
      %1067 = vmatprep.subr.mxu0 0.0
      %1068 = vmatpush1.msra.mxu0 0.0
      %1069 = vmatprep.subr.mxu0 0.0
      %1070 = vmatpush1.msra.mxu0 0.0
      %1071 = vmatprep.subr.mxu0 0.0
      %1072 = vmatpush1.msra.mxu0 0.0
      %1073 = vmatprep.subr.mxu0 0.0
      %1074 = vmatpush1.msra.mxu0 0.0
      %1075 = vmatprep.subr.mxu0 0.0
      %1076 = vmatpush1.msra.mxu0 0.0
      %1077 = vmatprep.subr.mxu0 0.0
      %1078 = vmatpush1.msra.mxu0 0.0
      %1079 = vmatprep.subr.mxu0 0.0
      %1080 = vmatpush1.msra.mxu0 0.0
      %1081 = vmatprep.subr.mxu0 0.0
      %1082 = vmatpush1.msra.mxu0 0.0
      %1083 = vmatprep.subr.mxu0 0.0
      %1084 = vmatpush1.msra.mxu0 0.0
      %1085 = vmatprep.mubr.f32.mxu0 0.0
      %1086 = vmatmul.mubr.f32.gmra.mrb[0].mxu0 %v1010
      %v1087 = vpop.f32.mrb[0].mxu0
      %v1088 = vadd.f32 %v992, %v1087
      %v1089 = vpop.f32.mrb[0].mxu0
      %v1090 = vadd.f32 %v992, %v1089
      %1091 = vmatprep.mubr.f32.mxu0 0.0
      %1092 = vmatmul.mubr.f32.gmra.mrb[0].mxu0 %v1013
      %v1093 = vpop.f32.mrb[0].mxu0
      %v1094 = vadd.f32 %v997, %v1093
      %v1095 = vpop.f32.mrb[0].mxu0
      %v1096 = vadd.f32 %v997, %v1095
      %1097 = vmatprep.mubr.f32.mxu0 0.0
      %1098 = vmatmul.mubr.f32.gmra.mrb[0].mxu0 %v1016
      %v1099 = vpop.f32.mrb[0].mxu0
      %v1100 = vadd.f32 %v1002, %v1099
      %v1101 = vpop.f32.mrb[0].mxu0
      %v1102 = vadd.f32 %v1002, %v1101
      %1103 = vmatprep.mubr.f32.mxu0 0.0
      %1104 = vmatmul.mubr.f32.gmra.mrb[0].mxu0 %v1019
      %v1105 = vpop.f32.mrb[0].mxu0
      %v1106 = vadd.f32 %v1007, %v1105
      %v1107 = vpop.f32.mrb[0].mxu0
      %v1108 = vadd.f32 %v1007, %v1107
      %1109 = vdwg.mxu0
      %v1110 = vadd.f32 %v1088, %v743
      %v1111 = vadd.f32 %v1090, %v744
      %v1112 = vadd.f32 %v1094, %v745
      %v1113 = vadd.f32 %v1096, %v746
      %v1114 = vadd.f32 %v1100, %v747
      %v1115 = vadd.f32 %v1102, %v748
      %v1116 = vadd.f32 %v1106, %v749
      %v1117 = vadd.f32 %v1108, %v750
      %v1118 = vmax.f32 %v1110, 0.0
      %v1119 = vmax.f32 %v1111, 0.0
      %v1120 = vmax.f32 %v1112, 0.0
      %v1121 = vmax.f32 %v1113, 0.0
      %v1122 = vmax.f32 %v1114, 0.0
      %v1123 = vmax.f32 %v1115, 0.0
      %v1124 = vmax.f32 %v1116, 0.0
      %v1125 = vmax.f32 %v1117, 0.0
      %s1126 = scalar_lea.vmem %s285, 64
      %1127 = vst [vmem:[%s1126] sm:$0xff] %v1118
      %1128 = vst [vmem:[%s1126 + $0x8] sm:$0xff] %v1119
      %1129 = vst [vmem:[%s1126 + $0x10] sm:$0xff] %v1120
      %1130 = vst [vmem:[%s1126 + $0x18] sm:$0xff] %v1121
      %1131 = vst [vmem:[%s1126 + $0x20] sm:$0xff] %v1122
      %1132 = vst [vmem:[%s1126 + $0x28] sm:$0xff] %v1123
      %1133 = vst [vmem:[%s1126 + $0x30] sm:$0xff] %v1124
      %1134 = vst [vmem:[%s1126 + $0x38] sm:$0xff] %v1125
      %s1135 = smul.u32 2, %s18
      %p1136 = scmp.lt.s32.totalorder %s1135, 3
      %s1137 = scalar_select %p1136, %s1135, 3
      %s1138 = smul.addr %s1137, 8
      %s1139 = smul.addr %s1138, 8
      %s1140 = scalar_lea.vmem %s7, %s1139
      // Predicated region
      $region49: #{bottleneck_pallas.1} parent=47 // pred_check
        %p1141 = pneg %p188
      $region50: #{bottleneck_pallas.1} parent=47 // pred_check_branch
        %1143 = sbr.rel (%p1141) target = $region52
      $region51: #{bottleneck_pallas.1} parent=47 // pred_region
        %s1144 = smul.u32 2, %s18
      $region52: #{bottleneck_pallas.1} parent=47 // pred_fallthru
        _
    $region48: #{bottleneck_pallas.1} parent=5 // pred_fallthru
      _
    %p1145 = scmp.le.s32.totalorder 2, %s13
    // Predicated region
    $region53: #{bottleneck_pallas.1} parent=5 // pred_check
      %p1146 = pneg %p1145
    $region54: #{bottleneck_pallas.1} parent=5 // pred_check_branch
      %1148 = sbr.rel (%p1146) target = $region56
    $region55: #{bottleneck_pallas.1} parent=5 // pred_region
      %s1149 = ssub.s32 %s13, 2
      // Predicated region
      $region57: #{bottleneck_pallas.1} parent=55 // pred_check
        %p1150 = pneg %p194
      $region58: #{bottleneck_pallas.1} parent=55 // pred_check_branch
        %1152 = sbr.rel (%p1150) target = $region60
      $region59: #{bottleneck_pallas.1} parent=55 // pred_region
        %s1153 = smul.u32 2, %s19
        %p1154 = scmp.lt.s32.totalorder %s1153, 3
        %s1155 = scalar_select %p1154, %s1153, 3
        %s1156 = smul.addr %s1155, 8
        %s1157 = smul.addr %s1156, 8
        %s1158 = scalar_lea.vmem %s7, %s1157
      $region60: #{bottleneck_pallas.1} parent=55 // pred_fallthru
        _
    $region56: #{bottleneck_pallas.1} parent=5 // pred_fallthru
      _
  $region6: #{bottleneck_pallas.1} parent=0 // loop_footer
    %s17 = sadd.s32 1, %s13
  $region7: #{bottleneck_pallas.1} parent=0 // loop_footer_branch
    %12 = sbr.rel target = $region3
  $region8: #{bottleneck_pallas.1} parent=0 // loop_exit
    _

</llo_original>
